<compile_context>
chip_gen: v5e
topology: v5e:2x2
jax: 0.10.0
libtpu: 0.0.40
codegen_flags: <defaults>
</compile_context>

<pallas_src>
import functools

import jax
import jax.numpy as jnp
from jax import lax
from jax.experimental import pallas as pl
from jax.experimental.pallas import tpu as pltpu

BN_EPS = 1e-5


# ----------------------------------------------------------------------------
# Fused network kernel: 4 x (depthwise conv + 1x1 conv + PReLU + BN) + MLP head
# One grid step == one batch sample. All operands live in VMEM / SMEM.
# ----------------------------------------------------------------------------
def _net_kernel(x_ref, alphas_ref,
                dw1_ref, pw1_ref, af1_ref,
                dw2_ref, pw2_ref, af2_ref,
                dw3_ref, pw3_ref, af3_ref,
                dw4_ref, pw4_ref, af4_ref,
                w1_ref, haff_ref, w2_ref, b2_ref, w3_ref, b3_ref,
                o_ref,
                pad2_ref, pad3_ref, pad4_ref, *, dims):
    def prelu(z, alpha):
        return jnp.where(z >= 0, z, alpha * z)

    def sepconv(src_ref, dw_ref, pw_ref, af_ref, alpha, K, stride, L_out):
        # Depthwise conv: strided taps read straight from the zero-padded ref so
        # channels stay on lanes (no 4-D reshape / sublane gather of the old code).
        acc = dw_ref[0:1, :] * src_ref[pl.ds(0, L_out, stride=stride), :]
        for k in range(1, K):
            acc = acc + dw_ref[k:k + 1, :] * src_ref[pl.ds(k, L_out, stride=stride), :]
        # Pointwise 1x1 conv on the MXU; depthwise bias is pre-folded into af[0].
        y = jnp.dot(acc, pw_ref[...], preferred_element_type=jnp.float32) + af_ref[0:1, :]
        y = prelu(y, alpha)                                  # PReLU (shared alpha)
        return y * af_ref[1:2, :] + af_ref[2:3, :]           # BatchNorm1d (eval, folded)

    def refill(dst_ref, h, pad):
        # Zero the padded scratch buffer and drop the activation into the middle.
        dst_ref[...] = jnp.zeros_like(dst_ref)
        dst_ref[pad:pad + h.shape[0], :] = h

    (k1, s1, l1, _), (k2, s2, l2, p2), (k3, s3, l3, p3), (k4, s4, l4, p4) = dims

    h = sepconv(x_ref, dw1_ref, pw1_ref, af1_ref, alphas_ref[0], k1, s1, l1)
    refill(pad2_ref, h, p2)
    h = sepconv(pad2_ref, dw2_ref, pw2_ref, af2_ref, alphas_ref[1], k2, s2, l2)
    refill(pad3_ref, h, p3)
    h = sepconv(pad3_ref, dw3_ref, pw3_ref, af3_ref, alphas_ref[2], k3, s3, l3)
    refill(pad4_ref, h, p4)
    h = sepconv(pad4_ref, dw4_ref, pw4_ref, af4_ref, alphas_ref[3], k4, s4, l4)
    # h: (1, 256) — final length is 1, so this IS the Flatten() output row.

    z = jnp.dot(h, w1_ref[...], preferred_element_type=jnp.float32) + haff_ref[0:1, :]
    z = prelu(z, alphas_ref[4])                              # PReLU
    z = z * haff_ref[1:2, :] + haff_ref[2:3, :]              # BatchNorm1d (eval, folded)
    z = jnp.dot(z, w2_ref[...], preferred_element_type=jnp.float32) + b2_ref[...]
    z = jnp.maximum(z, 0.0)                                  # ReLU
    o_ref[...] = (jnp.dot(z, w3_ref[...], preferred_element_type=jnp.float32)
                  + b3_ref[...]).astype(o_ref.dtype)


# ----------------------------------------------------------------------------
# One-time parameter preparation (constant folding hoisted out of the forward)
# ----------------------------------------------------------------------------
def _bn_fold(gamma, beta, mean, var):
    scale = gamma / jnp.sqrt(var + BN_EPS)
    return scale.reshape(1, -1), (beta - mean * scale).reshape(1, -1)


def prepare_params(params):
    """Fold BN (eval) and the depthwise bias into per-block affine constants, once."""
    fp = {'conv_cfg': params['conv_cfg']}
    alphas = []
    for b, blk in enumerate(params['conv']):
        scale, shift = _bn_fold(blk['gamma'], blk['beta'], blk['mean'], blk['var'])
        # (x + dwb) @ pw + pwb  ==  x @ pw + (dwb @ pw + pwb); fold within the block only.
        pb_eff = blk['pw_b'] + blk['dw_b'] @ blk['pw_w']
        fp[f'dw{b}'] = blk['dw_w']                                     # (K, C_in)
        fp[f'pw{b}'] = blk['pw_w']                                     # (C_in, C_out)
        fp[f'aff{b}'] = jnp.concatenate([pb_eff, scale, shift], 0)     # (3, C_out)
        alphas.append(blk['alpha'].reshape(()))
    hp = params['head']
    hs, ht = _bn_fold(hp['gamma'], hp['beta'], hp['mean'], hp['var'])
    fp['w1'] = hp['w1']
    fp['haff'] = jnp.concatenate([hp['b1'], hs, ht], 0)                # (3, 64)
    fp['w2'], fp['b2'] = hp['w2'], hp['b2']
    fp['w3'], fp['b3'] = hp['w3'], hp['b3']
    alphas.append(hp['alpha'].reshape(()))
    fp['alphas'] = jnp.stack(alphas).astype(jnp.float32)               # (5,) -> SMEM
    return fp


# ----------------------------------------------------------------------------
# Forward pass (single pallas_call)
# ----------------------------------------------------------------------------
def net_forward(x_ncl, fp):
    """x_ncl: (N, C_in, L) float32, same axis convention as the PyTorch module."""
    N, C_in, L = x_ncl.shape
    cfg = fp['conv_cfg']                      # [(c_in, c_out, kernel, stride, pad), ...]
    lens = [L]
    for (_, _, k, s, p) in cfg:
        lens.append((lens[-1] + 2 * p - k) // s + 1)
    assert lens[-1] == 1, "architecture requires length to reduce to 1 before Flatten"
    NC = fp['b3'].shape[1]

    # NCW -> NLC (channels on lanes) and pre-pad block 1's length in glue.
    p1 = cfg[0][4]
    L_pad1 = L + 2 * p1
    x_pad = jnp.pad(jnp.transpose(x_ncl, (0, 2, 1)).astype(jnp.float32),
                    ((0, 0), (p1, p1), (0, 0)))

    dims = tuple((k, s, lens[i + 1], p) for i, (_, _, k, s, p) in enumerate(cfg))

    def rep(shape):                            # whole-array operand, revisited every step
        return pl.BlockSpec(shape, lambda n: (0,) * len(shape))

    in_specs = [pl.BlockSpec((None, L_pad1, C_in), lambda n: (n, 0, 0)),
                pl.BlockSpec(memory_space=pltpu.MemorySpace.SMEM)]      # PReLU alphas
    inputs = [x_pad, fp['alphas']]
    for b in range(4):
        for nm in (f'dw{b}', f'pw{b}', f'aff{b}'):
            in_specs.append(rep(fp[nm].shape))
            inputs.append(fp[nm])
    for nm in ('w1', 'haff', 'w2', 'b2', 'w3', 'b3'):
        in_specs.append(rep(fp[nm].shape))
        inputs.append(fp[nm])

    # Padded-activation scratch for blocks 2..4 (length + 2*pad, C_in-of-block).
    scratch = [pltpu.VMEM((lens[i] + 2 * cfg[i][4], cfg[i][0]), jnp.float32)
               for i in (1, 2, 3)]

    out = pl.pallas_call(
        functools.partial(_net_kernel, dims=dims),
        out_shape=jax.ShapeDtypeStruct((N, 1, NC), jnp.float32),
        grid=(N,),
        in_specs=in_specs,
        out_specs=pl.BlockSpec((None, 1, NC), lambda n: (n, 0, 0)),
        scratch_shapes=scratch,
        compiler_params=pltpu.CompilerParams(dimension_semantics=("parallel",)),
    )(*inputs)
    return out.reshape(N, NC)


# ----------------------------------------------------------------------------
# Parameters (deterministic synthetic init) and pure-JAX reference
# ----------------------------------------------------------------------------
def init_net_params(key, in_channels, num_classes):
    conv_cfg = [(in_channels, 32, 8, 2, 3), (32, 64, 8, 4, 2),
                (64, 128, 8, 4, 2), (128, 256, 8, 4, 2)]
    params = {'conv': [], 'conv_cfg': conv_cfg}
    for (ci, co, k, s, p) in conv_cfg:
        key, *ks = jax.random.split(key, 9)
        params['conv'].append(dict(
            dw_w=0.2 * jax.random.normal(ks[0], (k, ci), jnp.float32),
            dw_b=0.1 * jax.random.normal(ks[1], (1, ci), jnp.float32),
            pw_w=jax.random.normal(ks[2], (ci, co), jnp.float32) / jnp.sqrt(ci * 1.0),
            pw_b=0.1 * jax.random.normal(ks[3], (1, co), jnp.float32),
            alpha=jnp.full((1, 1), 0.25, jnp.float32),   # PReLU default init
            gamma=1.0 + 0.1 * jax.random.normal(ks[4], (co,), jnp.float32),
            beta=0.1 * jax.random.normal(ks[5], (co,), jnp.float32),
            mean=0.1 * jax.random.normal(ks[6], (co,), jnp.float32),
            var=0.5 + jax.random.uniform(ks[7], (co,), jnp.float32),
        ))
    key, *ks = jax.random.split(key, 11)
    params['head'] = dict(
        w1=jax.random.normal(ks[0], (256, 64), jnp.float32) / 16.0,
        b1=0.1 * jax.random.normal(ks[1], (1, 64), jnp.float32),
        alpha=jnp.full((1, 1), 0.25, jnp.float32),
        gamma=1.0 + 0.1 * jax.random.normal(ks[2], (64,), jnp.float32),
        beta=0.1 * jax.random.normal(ks[3], (64,), jnp.float32),
        mean=0.1 * jax.random.normal(ks[4], (64,), jnp.float32),
        var=0.5 + jax.random.uniform(ks[5], (64,), jnp.float32),
        w2=jax.random.normal(ks[6], (64, 64), jnp.float32) / 8.0,
        b2=0.1 * jax.random.normal(ks[7], (1, 64), jnp.float32),
        w3=jax.random.normal(ks[8], (64, num_classes), jnp.float32) / 8.0,
        b3=0.1 * jax.random.normal(ks[9], (1, num_classes), jnp.float32),
    )
    return params


def ref_forward(x_ncl, params):
    """Pure-JAX reference (lax.conv) with identical eval-mode semantics."""
    h = x_ncl.astype(jnp.float32)
    for blk, (_, co, k, s, p) in zip(params['conv'], params['conv_cfg']):
        c_in = h.shape[1]
        wd = jnp.transpose(blk['dw_w'], (1, 0))[:, None, :]      # (C_in, 1, K)
        h = lax.conv_general_dilated(h, wd, (s,), [(p, p)],
                                     dimension_numbers=('NCH', 'OIH', 'NCH'),
                                     feature_group_count=c_in)
        h = h + blk['dw_b'].reshape(1, c_in, 1)
        wp = jnp.transpose(blk['pw_w'], (1, 0))[:, :, None]      # (C_out, C_in, 1)
        h = lax.conv_general_dilated(h, wp, (1,), [(0, 0)],
                                     dimension_numbers=('NCH', 'OIH', 'NCH'))
        h = h + blk['pw_b'].reshape(1, co, 1)
        a = blk['alpha'][0, 0]
        h = jnp.where(h >= 0, h, a * h)
        h = (h - blk['mean'].reshape(1, co, 1)) / jnp.sqrt(blk['var'].reshape(1, co, 1) + BN_EPS)
        h = h * blk['gamma'].reshape(1, co, 1) + blk['beta'].reshape(1, co, 1)
    N = h.shape[0]
    h = h.reshape(N, -1)
    hp = params['head']
    z = h @ hp['w1'] + hp['b1']
    a = hp['alpha'][0, 0]
    z = jnp.where(z >= 0, z, a * z)
    z = (z - hp['mean'][None, :]) / jnp.sqrt(hp['var'][None, :] + BN_EPS)
    z = z * hp['gamma'][None, :] + hp['beta'][None, :]
    z = jnp.maximum(z @ hp['w2'] + hp['b2'], 0.0)
    return z @ hp['w3'] + hp['b3']


if __name__ == "__main__":
    key = jax.random.PRNGKey(0)
    kx, kp = jax.random.split(key)
    # L=128 is required by the architecture: four strided convs reduce 128 -> 1 so
    # that Flatten produces exactly 256 features for Linear(256, 64).
    N, C_in, L, num_classes = 2, 4, 128, 5
    x = jax.random.normal(kx, (N, C_in, L), jnp.float32)         # PyTorch-style NCW
    params = init_net_params(kp, C_in, num_classes)
    fused = prepare_params(params)                                # one-time folding

    out = jax.block_until_ready(net_forward(x, fused))
    ref = jax.block_until_ready(ref_forward(x, params))

    assert out.shape == (N, num_classes), out.shape
    if not jnp.allclose(out, ref, rtol=1e-4, atol=1e-4):
        raise AssertionError(f"mismatch vs reference: max err "
                             f"{float(jnp.max(jnp.abs(out - ref)))}")
    print("KERNEL_OK")
</pallas_src>

<mosaic_0001>
module attributes {stable_mosaic.version = 11 : i64} {
  func.func @_net_kernel(%arg0: i32, %arg1: memref<1x134x4xf32, #tpu.memory_space<vmem>>, %arg2: memref<5xf32, #tpu.memory_space<smem>>, %arg3: memref<8x4xf32, #tpu.memory_space<vmem>>, %arg4: memref<4x32xf32, #tpu.memory_space<vmem>>, %arg5: memref<3x32xf32, #tpu.memory_space<vmem>>, %arg6: memref<8x32xf32, #tpu.memory_space<vmem>>, %arg7: memref<32x64xf32, #tpu.memory_space<vmem>>, %arg8: memref<3x64xf32, #tpu.memory_space<vmem>>, %arg9: memref<8x64xf32, #tpu.memory_space<vmem>>, %arg10: memref<64x128xf32, #tpu.memory_space<vmem>>, %arg11: memref<3x128xf32, #tpu.memory_space<vmem>>, %arg12: memref<8x128xf32, #tpu.memory_space<vmem>>, %arg13: memref<128x256xf32, #tpu.memory_space<vmem>>, %arg14: memref<3x256xf32, #tpu.memory_space<vmem>>, %arg15: memref<256x64xf32, #tpu.memory_space<vmem>>, %arg16: memref<3x64xf32, #tpu.memory_space<vmem>>, %arg17: memref<64x64xf32, #tpu.memory_space<vmem>>, %arg18: memref<1x64xf32, #tpu.memory_space<vmem>>, %arg19: memref<64x5xf32, #tpu.memory_space<vmem>>, %arg20: memref<1x5xf32, #tpu.memory_space<vmem>>, %arg21: memref<1x1x5xf32, #tpu.memory_space<vmem>>, %arg22: memref<68x32xf32, #tpu.memory_space<vmem>>, %arg23: memref<20x64xf32, #tpu.memory_space<vmem>>, %arg24: memref<8x128xf32, #tpu.memory_space<vmem>>) attributes {dimension_semantics = [#tpu.dimension_semantics<parallel>], iteration_bounds = array<i64: 2>, scalar_prefetch = 0 : i64, scratch_operands = 3 : i64, tpu.core_type = #tpu.core_type<tc>, window_params = [{transform_indices = @transform_0, window_bounds = array<i64: 1, 134, 4>}, {transform_indices = @transform_1, window_bounds = array<i64: 5>}, {pipeline_mode = #tpu.pipeline_mode<synchronous>, transform_indices = @transform_2, window_bounds = array<i64: 8, 4>}, {pipeline_mode = #tpu.pipeline_mode<synchronous>, transform_indices = @transform_3, window_bounds = array<i64: 4, 32>}, {pipeline_mode = #tpu.pipeline_mode<synchronous>, transform_indices = @transform_4, window_bounds = array<i64: 3, 32>}, {pipeline_mode = #tpu.pipeline_mode<synchronous>, transform_indices = @transform_5, window_bounds = array<i64: 8, 32>}, {pipeline_mode = #tpu.pipeline_mode<synchronous>, transform_indices = @transform_6, window_bounds = array<i64: 32, 64>}, {pipeline_mode = #tpu.pipeline_mode<synchronous>, transform_indices = @transform_7, window_bounds = array<i64: 3, 64>}, {pipeline_mode = #tpu.pipeline_mode<synchronous>, transform_indices = @transform_8, window_bounds = array<i64: 8, 64>}, {pipeline_mode = #tpu.pipeline_mode<synchronous>, transform_indices = @transform_9, window_bounds = array<i64: 64, 128>}, {pipeline_mode = #tpu.pipeline_mode<synchronous>, transform_indices = @transform_10, window_bounds = array<i64: 3, 128>}, {pipeline_mode = #tpu.pipeline_mode<synchronous>, transform_indices = @transform_11, window_bounds = array<i64: 8, 128>}, {pipeline_mode = #tpu.pipeline_mode<synchronous>, transform_indices = @transform_12, window_bounds = array<i64: 128, 256>}, {pipeline_mode = #tpu.pipeline_mode<synchronous>, transform_indices = @transform_13, window_bounds = array<i64: 3, 256>}, {pipeline_mode = #tpu.pipeline_mode<synchronous>, transform_indices = @transform_14, window_bounds = array<i64: 256, 64>}, {pipeline_mode = #tpu.pipeline_mode<synchronous>, transform_indices = @transform_15, window_bounds = array<i64: 3, 64>}, {pipeline_mode = #tpu.pipeline_mode<synchronous>, transform_indices = @transform_16, window_bounds = array<i64: 64, 64>}, {pipeline_mode = #tpu.pipeline_mode<synchronous>, transform_indices = @transform_17, window_bounds = array<i64: 1, 64>}, {pipeline_mode = #tpu.pipeline_mode<synchronous>, transform_indices = @transform_18, window_bounds = array<i64: 64, 5>}, {pipeline_mode = #tpu.pipeline_mode<synchronous>, transform_indices = @transform_19, window_bounds = array<i64: 1, 5>}, {transform_indices = @transform_20, window_bounds = array<i64: 1, 1, 5>}]} {
    %c0 = arith.constant 0 : index
    %0 = memref.load %arg2[%c0] : memref<5xf32, #tpu.memory_space<smem>>
    %c0_0 = arith.constant 0 : index
    %c0_1 = arith.constant 0 : index
    %1 = vector.load %arg3[%c0_0, %c0_1] : memref<8x4xf32, #tpu.memory_space<vmem>>, vector<1x4xf32>
    %c0_2 = arith.constant 0 : index
    %c0_3 = arith.constant 0 : index
    %c0_4 = arith.constant 0 : index
    %2 = tpu.strided_load %arg1[%c0_2, %c0_3, %c0_4] {strides = array<i32: 1, 2, 1>} : memref<1x134x4xf32, #tpu.memory_space<vmem>>, vector<1x64x4xf32>
    %3 = vector.shape_cast %2 : vector<1x64x4xf32> to vector<64x4xf32>
    %4 = vector.broadcast %1 : vector<1x4xf32> to vector<64x4xf32>
    %5 = arith.mulf %4, %3 : vector<64x4xf32>
    %c1 = arith.constant 1 : index
    %c0_5 = arith.constant 0 : index
    %6 = vector.load %arg3[%c1, %c0_5] : memref<8x4xf32, #tpu.memory_space<vmem>>, vector<1x4xf32>
    %c0_6 = arith.constant 0 : index
    %c1_7 = arith.constant 1 : index
    %c0_8 = arith.constant 0 : index
    %7 = tpu.strided_load %arg1[%c0_6, %c1_7, %c0_8] {strides = array<i32: 1, 2, 1>} : memref<1x134x4xf32, #tpu.memory_space<vmem>>, vector<1x64x4xf32>
    %8 = vector.shape_cast %7 : vector<1x64x4xf32> to vector<64x4xf32>
    %9 = vector.broadcast %6 : vector<1x4xf32> to vector<64x4xf32>
    %10 = arith.mulf %9, %8 : vector<64x4xf32>
    %11 = arith.addf %5, %10 : vector<64x4xf32>
    %c2 = arith.constant 2 : index
    %c0_9 = arith.constant 0 : index
    %12 = vector.load %arg3[%c2, %c0_9] : memref<8x4xf32, #tpu.memory_space<vmem>>, vector<1x4xf32>
    %c0_10 = arith.constant 0 : index
    %c2_11 = arith.constant 2 : index
    %c0_12 = arith.constant 0 : index
    %13 = tpu.strided_load %arg1[%c0_10, %c2_11, %c0_12] {strides = array<i32: 1, 2, 1>} : memref<1x134x4xf32, #tpu.memory_space<vmem>>, vector<1x64x4xf32>
    %14 = vector.shape_cast %13 : vector<1x64x4xf32> to vector<64x4xf32>
    %15 = vector.broadcast %12 : vector<1x4xf32> to vector<64x4xf32>
    %16 = arith.mulf %15, %14 : vector<64x4xf32>
    %17 = arith.addf %11, %16 : vector<64x4xf32>
    %c3 = arith.constant 3 : index
    %c0_13 = arith.constant 0 : index
    %18 = vector.load %arg3[%c3, %c0_13] : memref<8x4xf32, #tpu.memory_space<vmem>>, vector<1x4xf32>
    %c0_14 = arith.constant 0 : index
    %c3_15 = arith.constant 3 : index
    %c0_16 = arith.constant 0 : index
    %19 = tpu.strided_load %arg1[%c0_14, %c3_15, %c0_16] {strides = array<i32: 1, 2, 1>} : memref<1x134x4xf32, #tpu.memory_space<vmem>>, vector<1x64x4xf32>
    %20 = vector.shape_cast %19 : vector<1x64x4xf32> to vector<64x4xf32>
    %21 = vector.broadcast %18 : vector<1x4xf32> to vector<64x4xf32>
    %22 = arith.mulf %21, %20 : vector<64x4xf32>
    %23 = arith.addf %17, %22 : vector<64x4xf32>
    %c4 = arith.constant 4 : index
    %c0_17 = arith.constant 0 : index
    %24 = vector.load %arg3[%c4, %c0_17] : memref<8x4xf32, #tpu.memory_space<vmem>>, vector<1x4xf32>
    %c0_18 = arith.constant 0 : index
    %c4_19 = arith.constant 4 : index
    %c0_20 = arith.constant 0 : index
    %25 = tpu.strided_load %arg1[%c0_18, %c4_19, %c0_20] {strides = array<i32: 1, 2, 1>} : memref<1x134x4xf32, #tpu.memory_space<vmem>>, vector<1x64x4xf32>
    %26 = vector.shape_cast %25 : vector<1x64x4xf32> to vector<64x4xf32>
    %27 = vector.broadcast %24 : vector<1x4xf32> to vector<64x4xf32>
    %28 = arith.mulf %27, %26 : vector<64x4xf32>
    %29 = arith.addf %23, %28 : vector<64x4xf32>
    %c5 = arith.constant 5 : index
    %c0_21 = arith.constant 0 : index
    %30 = vector.load %arg3[%c5, %c0_21] : memref<8x4xf32, #tpu.memory_space<vmem>>, vector<1x4xf32>
    %c0_22 = arith.constant 0 : index
    %c5_23 = arith.constant 5 : index
    %c0_24 = arith.constant 0 : index
    %31 = tpu.strided_load %arg1[%c0_22, %c5_23, %c0_24] {strides = array<i32: 1, 2, 1>} : memref<1x134x4xf32, #tpu.memory_space<vmem>>, vector<1x64x4xf32>
    %32 = vector.shape_cast %31 : vector<1x64x4xf32> to vector<64x4xf32>
    %33 = vector.broadcast %30 : vector<1x4xf32> to vector<64x4xf32>
    %34 = arith.mulf %33, %32 : vector<64x4xf32>
    %35 = arith.addf %29, %34 : vector<64x4xf32>
    %c6 = arith.constant 6 : index
    %c0_25 = arith.constant 0 : index
    %36 = vector.load %arg3[%c6, %c0_25] : memref<8x4xf32, #tpu.memory_space<vmem>>, vector<1x4xf32>
    %c0_26 = arith.constant 0 : index
    %c6_27 = arith.constant 6 : index
    %c0_28 = arith.constant 0 : index
    %37 = tpu.strided_load %arg1[%c0_26, %c6_27, %c0_28] {strides = array<i32: 1, 2, 1>} : memref<1x134x4xf32, #tpu.memory_space<vmem>>, vector<1x64x4xf32>
    %38 = vector.shape_cast %37 : vector<1x64x4xf32> to vector<64x4xf32>
    %39 = vector.broadcast %36 : vector<1x4xf32> to vector<64x4xf32>
    %40 = arith.mulf %39, %38 : vector<64x4xf32>
    %41 = arith.addf %35, %40 : vector<64x4xf32>
    %c7 = arith.constant 7 : index
    %c0_29 = arith.constant 0 : index
    %42 = vector.load %arg3[%c7, %c0_29] : memref<8x4xf32, #tpu.memory_space<vmem>>, vector<1x4xf32>
    %c0_30 = arith.constant 0 : index
    %c7_31 = arith.constant 7 : index
    %c0_32 = arith.constant 0 : index
    %43 = tpu.strided_load %arg1[%c0_30, %c7_31, %c0_32] {strides = array<i32: 1, 2, 1>} : memref<1x134x4xf32, #tpu.memory_space<vmem>>, vector<1x64x4xf32>
    %44 = vector.shape_cast %43 : vector<1x64x4xf32> to vector<64x4xf32>
    %45 = vector.broadcast %42 : vector<1x4xf32> to vector<64x4xf32>
    %46 = arith.mulf %45, %44 : vector<64x4xf32>
    %47 = arith.addf %41, %46 : vector<64x4xf32>
    %c0_33 = arith.constant 0 : index
    %c0_34 = arith.constant 0 : index
    %48 = vector.load %arg4[%c0_33, %c0_34] : memref<4x32xf32, #tpu.memory_space<vmem>>, vector<4x32xf32>
    %cst = arith.constant dense<0.000000e+00> : vector<64x32xf32>
    %49 = tpu.matmul %47, %48, %cst {dimension_numbers = #tpu.dot_dimension_numbers<[1], [0], [0], [1], [0, 0, 1, 1], [], []>} : vector<64x4xf32>, vector<4x32xf32>, vector<64x32xf32> -> vector<64x32xf32>
    %c0_35 = arith.constant 0 : index
    %c0_36 = arith.constant 0 : index
    %50 = vector.load %arg5[%c0_35, %c0_36] : memref<3x32xf32, #tpu.memory_space<vmem>>, vector<1x32xf32>
    %51 = vector.broadcast %50 : vector<1x32xf32> to vector<64x32xf32>
    %52 = arith.addf %49, %51 : vector<64x32xf32>
    %cst_37 = arith.constant 0.000000e+00 : f32
    %53 = vector.broadcast %cst_37 : f32 to vector<64x32xf32>
    %54 = arith.cmpf oge, %52, %53 : vector<64x32xf32>
    %55 = vector.broadcast %0 : f32 to vector<64x32xf32>
    %56 = arith.mulf %55, %52 : vector<64x32xf32>
    %57 = arith.select %54, %52, %56 : vector<64x32xi1>, vector<64x32xf32>
    %c1_38 = arith.constant 1 : index
    %c0_39 = arith.constant 0 : index
    %58 = vector.load %arg5[%c1_38, %c0_39] : memref<3x32xf32, #tpu.memory_space<vmem>>, vector<1x32xf32>
    %59 = vector.broadcast %58 : vector<1x32xf32> to vector<64x32xf32>
    %60 = arith.mulf %57, %59 : vector<64x32xf32>
    %c2_40 = arith.constant 2 : index
    %c0_41 = arith.constant 0 : index
    %61 = vector.load %arg5[%c2_40, %c0_41] : memref<3x32xf32, #tpu.memory_space<vmem>>, vector<1x32xf32>
    %62 = vector.broadcast %61 : vector<1x32xf32> to vector<64x32xf32>
    %63 = arith.addf %60, %62 : vector<64x32xf32>
    %cst_42 = arith.constant 0.000000e+00 : f32
    %64 = vector.broadcast %cst_42 : f32 to vector<68x32xf32>
    %c0_43 = arith.constant 0 : index
    %c0_44 = arith.constant 0 : index
    %65 = vector.load %arg22[%c0_43, %c0_44] : memref<68x32xf32, #tpu.memory_space<vmem>>, vector<68x32xf32>
    tpu.vector_store %arg22[%c0_43, %c0_44], %64 {strides = array<i32>} : memref<68x32xf32, #tpu.memory_space<vmem>>, vector<68x32xf32>,
    %c2_45 = arith.constant 2 : index
    %c0_46 = arith.constant 0 : index
    %66 = vector.load %arg22[%c2_45, %c0_46] : memref<68x32xf32, #tpu.memory_space<vmem>>, vector<64x32xf32>
    tpu.vector_store %arg22[%c2_45, %c0_46], %63 {strides = array<i32>} : memref<68x32xf32, #tpu.memory_space<vmem>>, vector<64x32xf32>,
    %c1_47 = arith.constant 1 : index
    %67 = memref.load %arg2[%c1_47] : memref<5xf32, #tpu.memory_space<smem>>
    %c0_48 = arith.constant 0 : index
    %c0_49 = arith.constant 0 : index
    %68 = vector.load %arg6[%c0_48, %c0_49] : memref<8x32xf32, #tpu.memory_space<vmem>>, vector<1x32xf32>
    %c0_50 = arith.constant 0 : index
    %c0_51 = arith.constant 0 : index
    %69 = tpu.strided_load %arg22[%c0_50, %c0_51] {strides = array<i32: 4, 1>} : memref<68x32xf32, #tpu.memory_space<vmem>>, vector<16x32xf32>
    %70 = vector.broadcast %68 : vector<1x32xf32> to vector<16x32xf32>
    %71 = arith.mulf %70, %69 : vector<16x32xf32>
    %c1_52 = arith.constant 1 : index
    %c0_53 = arith.constant 0 : index
    %72 = vector.load %arg6[%c1_52, %c0_53] : memref<8x32xf32, #tpu.memory_space<vmem>>, vector<1x32xf32>
    %c1_54 = arith.constant 1 : index
    %c0_55 = arith.constant 0 : index
    %73 = tpu.strided_load %arg22[%c1_54, %c0_55] {strides = array<i32: 4, 1>} : memref<68x32xf32, #tpu.memory_space<vmem>>, vector<16x32xf32>
    %74 = vector.broadcast %72 : vector<1x32xf32> to vector<16x32xf32>
    %75 = arith.mulf %74, %73 : vector<16x32xf32>
    %76 = arith.addf %71, %75 : vector<16x32xf32>
    %c2_56 = arith.constant 2 : index
    %c0_57 = arith.constant 0 : index
    %77 = vector.load %arg6[%c2_56, %c0_57] : memref<8x32xf32, #tpu.memory_space<vmem>>, vector<1x32xf32>
    %c2_58 = arith.constant 2 : index
    %c0_59 = arith.constant 0 : index
    %78 = tpu.strided_load %arg22[%c2_58, %c0_59] {strides = array<i32: 4, 1>} : memref<68x32xf32, #tpu.memory_space<vmem>>, vector<16x32xf32>
    %79 = vector.broadcast %77 : vector<1x32xf32> to vector<16x32xf32>
    %80 = arith.mulf %79, %78 : vector<16x32xf32>
    %81 = arith.addf %76, %80 : vector<16x32xf32>
    %c3_60 = arith.constant 3 : index
    %c0_61 = arith.constant 0 : index
    %82 = vector.load %arg6[%c3_60, %c0_61] : memref<8x32xf32, #tpu.memory_space<vmem>>, vector<1x32xf32>
    %c3_62 = arith.constant 3 : index
    %c0_63 = arith.constant 0 : index
    %83 = tpu.strided_load %arg22[%c3_62, %c0_63] {strides = array<i32: 4, 1>} : memref<68x32xf32, #tpu.memory_space<vmem>>, vector<16x32xf32>
    %84 = vector.broadcast %82 : vector<1x32xf32> to vector<16x32xf32>
    %85 = arith.mulf %84, %83 : vector<16x32xf32>
    %86 = arith.addf %81, %85 : vector<16x32xf32>
    %c4_64 = arith.constant 4 : index
    %c0_65 = arith.constant 0 : index
    %87 = vector.load %arg6[%c4_64, %c0_65] : memref<8x32xf32, #tpu.memory_space<vmem>>, vector<1x32xf32>
    %c4_66 = arith.constant 4 : index
    %c0_67 = arith.constant 0 : index
    %88 = tpu.strided_load %arg22[%c4_66, %c0_67] {strides = array<i32: 4, 1>} : memref<68x32xf32, #tpu.memory_space<vmem>>, vector<16x32xf32>
    %89 = vector.broadcast %87 : vector<1x32xf32> to vector<16x32xf32>
    %90 = arith.mulf %89, %88 : vector<16x32xf32>
    %91 = arith.addf %86, %90 : vector<16x32xf32>
    %c5_68 = arith.constant 5 : index
    %c0_69 = arith.constant 0 : index
    %92 = vector.load %arg6[%c5_68, %c0_69] : memref<8x32xf32, #tpu.memory_space<vmem>>, vector<1x32xf32>
    %c5_70 = arith.constant 5 : index
    %c0_71 = arith.constant 0 : index
    %93 = tpu.strided_load %arg22[%c5_70, %c0_71] {strides = array<i32: 4, 1>} : memref<68x32xf32, #tpu.memory_space<vmem>>, vector<16x32xf32>
    %94 = vector.broadcast %92 : vector<1x32xf32> to vector<16x32xf32>
    %95 = arith.mulf %94, %93 : vector<16x32xf32>
    %96 = arith.addf %91, %95 : vector<16x32xf32>
    %c6_72 = arith.constant 6 : index
    %c0_73 = arith.constant 0 : index
    %97 = vector.load %arg6[%c6_72, %c0_73] : memref<8x32xf32, #tpu.memory_space<vmem>>, vector<1x32xf32>
    %c6_74 = arith.constant 6 : index
    %c0_75 = arith.constant 0 : index
    %98 = tpu.strided_load %arg22[%c6_74, %c0_75] {strides = array<i32: 4, 1>} : memref<68x32xf32, #tpu.memory_space<vmem>>, vector<16x32xf32>
    %99 = vector.broadcast %97 : vector<1x32xf32> to vector<16x32xf32>
    %100 = arith.mulf %99, %98 : vector<16x32xf32>
    %101 = arith.addf %96, %100 : vector<16x32xf32>
    %c7_76 = arith.constant 7 : index
    %c0_77 = arith.constant 0 : index
    %102 = vector.load %arg6[%c7_76, %c0_77] : memref<8x32xf32, #tpu.memory_space<vmem>>, vector<1x32xf32>
    %c7_78 = arith.constant 7 : index
    %c0_79 = arith.constant 0 : index
    %103 = tpu.strided_load %arg22[%c7_78, %c0_79] {strides = array<i32: 4, 1>} : memref<68x32xf32, #tpu.memory_space<vmem>>, vector<16x32xf32>
    %104 = vector.broadcast %102 : vector<1x32xf32> to vector<16x32xf32>
    %105 = arith.mulf %104, %103 : vector<16x32xf32>
    %106 = arith.addf %101, %105 : vector<16x32xf32>
    %c0_80 = arith.constant 0 : index
    %c0_81 = arith.constant 0 : index
    %107 = vector.load %arg7[%c0_80, %c0_81] : memref<32x64xf32, #tpu.memory_space<vmem>>, vector<32x64xf32>
    %cst_82 = arith.constant dense<0.000000e+00> : vector<16x64xf32>
    %108 = tpu.matmul %106, %107, %cst_82 {dimension_numbers = #tpu.dot_dimension_numbers<[1], [0], [0], [1], [0, 0, 1, 1], [], []>} : vector<16x32xf32>, vector<32x64xf32>, vector<16x64xf32> -> vector<16x64xf32>
    %c0_83 = arith.constant 0 : index
    %c0_84 = arith.constant 0 : index
    %109 = vector.load %arg8[%c0_83, %c0_84] : memref<3x64xf32, #tpu.memory_space<vmem>>, vector<1x64xf32>
    %110 = vector.broadcast %109 : vector<1x64xf32> to vector<16x64xf32>
    %111 = arith.addf %108, %110 : vector<16x64xf32>
    %cst_85 = arith.constant 0.000000e+00 : f32
    %112 = vector.broadcast %cst_85 : f32 to vector<16x64xf32>
    %113 = arith.cmpf oge, %111, %112 : vector<16x64xf32>
    %114 = vector.broadcast %67 : f32 to vector<16x64xf32>
    %115 = arith.mulf %114, %111 : vector<16x64xf32>
    %116 = arith.select %113, %111, %115 : vector<16x64xi1>, vector<16x64xf32>
    %c1_86 = arith.constant 1 : index
    %c0_87 = arith.constant 0 : index
    %117 = vector.load %arg8[%c1_86, %c0_87] : memref<3x64xf32, #tpu.memory_space<vmem>>, vector<1x64xf32>
    %118 = vector.broadcast %117 : vector<1x64xf32> to vector<16x64xf32>
    %119 = arith.mulf %116, %118 : vector<16x64xf32>
    %c2_88 = arith.constant 2 : index
    %c0_89 = arith.constant 0 : index
    %120 = vector.load %arg8[%c2_88, %c0_89] : memref<3x64xf32, #tpu.memory_space<vmem>>, vector<1x64xf32>
    %121 = vector.broadcast %120 : vector<1x64xf32> to vector<16x64xf32>
    %122 = arith.addf %119, %121 : vector<16x64xf32>
    %cst_90 = arith.constant 0.000000e+00 : f32
    %123 = vector.broadcast %cst_90 : f32 to vector<20x64xf32>
    %c0_91 = arith.constant 0 : index
    %c0_92 = arith.constant 0 : index
    %124 = vector.load %arg23[%c0_91, %c0_92] : memref<20x64xf32, #tpu.memory_space<vmem>>, vector<20x64xf32>
    tpu.vector_store %arg23[%c0_91, %c0_92], %123 {strides = array<i32>} : memref<20x64xf32, #tpu.memory_space<vmem>>, vector<20x64xf32>,
    %c2_93 = arith.constant 2 : index
    %c0_94 = arith.constant 0 : index
    %125 = vector.load %arg23[%c2_93, %c0_94] : memref<20x64xf32, #tpu.memory_space<vmem>>, vector<16x64xf32>
    tpu.vector_store %arg23[%c2_93, %c0_94], %122 {strides = array<i32>} : memref<20x64xf32, #tpu.memory_space<vmem>>, vector<16x64xf32>,
    %c2_95 = arith.constant 2 : index
    %126 = memref.load %arg2[%c2_95] : memref<5xf32, #tpu.memory_space<smem>>
    %c0_96 = arith.constant 0 : index
    %c0_97 = arith.constant 0 : index
    %127 = vector.load %arg9[%c0_96, %c0_97] : memref<8x64xf32, #tpu.memory_space<vmem>>, vector<1x64xf32>
    %c0_98 = arith.constant 0 : index
    %c0_99 = arith.constant 0 : index
    %128 = tpu.strided_load %arg23[%c0_98, %c0_99] {strides = array<i32: 4, 1>} : memref<20x64xf32, #tpu.memory_space<vmem>>, vector<4x64xf32>
    %129 = vector.broadcast %127 : vector<1x64xf32> to vector<4x64xf32>
    %130 = arith.mulf %129, %128 : vector<4x64xf32>
    %c1_100 = arith.constant 1 : index
    %c0_101 = arith.constant 0 : index
    %131 = vector.load %arg9[%c1_100, %c0_101] : memref<8x64xf32, #tpu.memory_space<vmem>>, vector<1x64xf32>
    %c1_102 = arith.constant 1 : index
    %c0_103 = arith.constant 0 : index
    %132 = tpu.strided_load %arg23[%c1_102, %c0_103] {strides = array<i32: 4, 1>} : memref<20x64xf32, #tpu.memory_space<vmem>>, vector<4x64xf32>
    %133 = vector.broadcast %131 : vector<1x64xf32> to vector<4x64xf32>
    %134 = arith.mulf %133, %132 : vector<4x64xf32>
    %135 = arith.addf %130, %134 : vector<4x64xf32>
    %c2_104 = arith.constant 2 : index
    %c0_105 = arith.constant 0 : index
    %136 = vector.load %arg9[%c2_104, %c0_105] : memref<8x64xf32, #tpu.memory_space<vmem>>, vector<1x64xf32>
    %c2_106 = arith.constant 2 : index
    %c0_107 = arith.constant 0 : index
    %137 = tpu.strided_load %arg23[%c2_106, %c0_107] {strides = array<i32: 4, 1>} : memref<20x64xf32, #tpu.memory_space<vmem>>, vector<4x64xf32>
    %138 = vector.broadcast %136 : vector<1x64xf32> to vector<4x64xf32>
    %139 = arith.mulf %138, %137 : vector<4x64xf32>
    %140 = arith.addf %135, %139 : vector<4x64xf32>
    %c3_108 = arith.constant 3 : index
    %c0_109 = arith.constant 0 : index
    %141 = vector.load %arg9[%c3_108, %c0_109] : memref<8x64xf32, #tpu.memory_space<vmem>>, vector<1x64xf32>
    %c3_110 = arith.constant 3 : index
    %c0_111 = arith.constant 0 : index
    %142 = tpu.strided_load %arg23[%c3_110, %c0_111] {strides = array<i32: 4, 1>} : memref<20x64xf32, #tpu.memory_space<vmem>>, vector<4x64xf32>
    %143 = vector.broadcast %141 : vector<1x64xf32> to vector<4x64xf32>
    %144 = arith.mulf %143, %142 : vector<4x64xf32>
    %145 = arith.addf %140, %144 : vector<4x64xf32>
    %c4_112 = arith.constant 4 : index
    %c0_113 = arith.constant 0 : index
    %146 = vector.load %arg9[%c4_112, %c0_113] : memref<8x64xf32, #tpu.memory_space<vmem>>, vector<1x64xf32>
    %c4_114 = arith.constant 4 : index
    %c0_115 = arith.constant 0 : index
    %147 = tpu.strided_load %arg23[%c4_114, %c0_115] {strides = array<i32: 4, 1>} : memref<20x64xf32, #tpu.memory_space<vmem>>, vector<4x64xf32>
    %148 = vector.broadcast %146 : vector<1x64xf32> to vector<4x64xf32>
    %149 = arith.mulf %148, %147 : vector<4x64xf32>
    %150 = arith.addf %145, %149 : vector<4x64xf32>
    %c5_116 = arith.constant 5 : index
    %c0_117 = arith.constant 0 : index
    %151 = vector.load %arg9[%c5_116, %c0_117] : memref<8x64xf32, #tpu.memory_space<vmem>>, vector<1x64xf32>
    %c5_118 = arith.constant 5 : index
    %c0_119 = arith.constant 0 : index
    %152 = tpu.strided_load %arg23[%c5_118, %c0_119] {strides = array<i32: 4, 1>} : memref<20x64xf32, #tpu.memory_space<vmem>>, vector<4x64xf32>
    %153 = vector.broadcast %151 : vector<1x64xf32> to vector<4x64xf32>
    %154 = arith.mulf %153, %152 : vector<4x64xf32>
    %155 = arith.addf %150, %154 : vector<4x64xf32>
    %c6_120 = arith.constant 6 : index
    %c0_121 = arith.constant 0 : index
    %156 = vector.load %arg9[%c6_120, %c0_121] : memref<8x64xf32, #tpu.memory_space<vmem>>, vector<1x64xf32>
    %c6_122 = arith.constant 6 : index
    %c0_123 = arith.constant 0 : index
    %157 = tpu.strided_load %arg23[%c6_122, %c0_123] {strides = array<i32: 4, 1>} : memref<20x64xf32, #tpu.memory_space<vmem>>, vector<4x64xf32>
    %158 = vector.broadcast %156 : vector<1x64xf32> to vector<4x64xf32>
    %159 = arith.mulf %158, %157 : vector<4x64xf32>
    %160 = arith.addf %155, %159 : vector<4x64xf32>
    %c7_124 = arith.constant 7 : index
    %c0_125 = arith.constant 0 : index
    %161 = vector.load %arg9[%c7_124, %c0_125] : memref<8x64xf32, #tpu.memory_space<vmem>>, vector<1x64xf32>
    %c7_126 = arith.constant 7 : index
    %c0_127 = arith.constant 0 : index
    %162 = tpu.strided_load %arg23[%c7_126, %c0_127] {strides = array<i32: 4, 1>} : memref<20x64xf32, #tpu.memory_space<vmem>>, vector<4x64xf32>
    %163 = vector.broadcast %161 : vector<1x64xf32> to vector<4x64xf32>
    %164 = arith.mulf %163, %162 : vector<4x64xf32>
    %165 = arith.addf %160, %164 : vector<4x64xf32>
    %c0_128 = arith.constant 0 : index
    %c0_129 = arith.constant 0 : index
    %166 = vector.load %arg10[%c0_128, %c0_129] : memref<64x128xf32, #tpu.memory_space<vmem>>, vector<64x128xf32>
    %cst_130 = arith.constant dense<0.000000e+00> : vector<4x128xf32>
    %167 = tpu.matmul %165, %166, %cst_130 {dimension_numbers = #tpu.dot_dimension_numbers<[1], [0], [0], [1], [0, 0, 1, 1], [], []>} : vector<4x64xf32>, vector<64x128xf32>, vector<4x128xf32> -> vector<4x128xf32>
    %c0_131 = arith.constant 0 : index
    %c0_132 = arith.constant 0 : index
    %168 = vector.load %arg11[%c0_131, %c0_132] : memref<3x128xf32, #tpu.memory_space<vmem>>, vector<1x128xf32>
    %169 = vector.broadcast %168 : vector<1x128xf32> to vector<4x128xf32>
    %170 = arith.addf %167, %169 : vector<4x128xf32>
    %cst_133 = arith.constant 0.000000e+00 : f32
    %171 = vector.broadcast %cst_133 : f32 to vector<4x128xf32>
    %172 = arith.cmpf oge, %170, %171 : vector<4x128xf32>
    %173 = vector.broadcast %126 : f32 to vector<4x128xf32>
    %174 = arith.mulf %173, %170 : vector<4x128xf32>
    %175 = arith.select %172, %170, %174 : vector<4x128xi1>, vector<4x128xf32>
    %c1_134 = arith.constant 1 : index
    %c0_135 = arith.constant 0 : index
    %176 = vector.load %arg11[%c1_134, %c0_135] : memref<3x128xf32, #tpu.memory_space<vmem>>, vector<1x128xf32>
    %177 = vector.broadcast %176 : vector<1x128xf32> to vector<4x128xf32>
    %178 = arith.mulf %175, %177 : vector<4x128xf32>
    %c2_136 = arith.constant 2 : index
    %c0_137 = arith.constant 0 : index
    %179 = vector.load %arg11[%c2_136, %c0_137] : memref<3x128xf32, #tpu.memory_space<vmem>>, vector<1x128xf32>
    %180 = vector.broadcast %179 : vector<1x128xf32> to vector<4x128xf32>
    %181 = arith.addf %178, %180 : vector<4x128xf32>
    %cst_138 = arith.constant 0.000000e+00 : f32
    %182 = vector.broadcast %cst_138 : f32 to vector<8x128xf32>
    %c0_139 = arith.constant 0 : index
    %c0_140 = arith.constant 0 : index
    %183 = vector.load %arg24[%c0_139, %c0_140] : memref<8x128xf32, #tpu.memory_space<vmem>>, vector<8x128xf32>
    tpu.vector_store %arg24[%c0_139, %c0_140], %182 {strides = array<i32>} : memref<8x128xf32, #tpu.memory_space<vmem>>, vector<8x128xf32>,
    %c2_141 = arith.constant 2 : index
    %c0_142 = arith.constant 0 : index
    %184 = vector.load %arg24[%c2_141, %c0_142] : memref<8x128xf32, #tpu.memory_space<vmem>>, vector<4x128xf32>
    tpu.vector_store %arg24[%c2_141, %c0_142], %181 {strides = array<i32>} : memref<8x128xf32, #tpu.memory_space<vmem>>, vector<4x128xf32>,
    %c3_143 = arith.constant 3 : index
    %185 = memref.load %arg2[%c3_143] : memref<5xf32, #tpu.memory_space<smem>>
    %c0_144 = arith.constant 0 : index
    %c0_145 = arith.constant 0 : index
    %186 = vector.load %arg12[%c0_144, %c0_145] : memref<8x128xf32, #tpu.memory_space<vmem>>, vector<1x128xf32>
    %c0_146 = arith.constant 0 : index
    %c0_147 = arith.constant 0 : index
    %187 = tpu.strided_load %arg24[%c0_146, %c0_147] {strides = array<i32: 4, 1>} : memref<8x128xf32, #tpu.memory_space<vmem>>, vector<1x128xf32>
    %188 = arith.mulf %186, %187 : vector<1x128xf32>
    %c1_148 = arith.constant 1 : index
    %c0_149 = arith.constant 0 : index
    %189 = vector.load %arg12[%c1_148, %c0_149] : memref<8x128xf32, #tpu.memory_space<vmem>>, vector<1x128xf32>
    %c1_150 = arith.constant 1 : index
    %c0_151 = arith.constant 0 : index
    %190 = tpu.strided_load %arg24[%c1_150, %c0_151] {strides = array<i32: 4, 1>} : memref<8x128xf32, #tpu.memory_space<vmem>>, vector<1x128xf32>
    %191 = arith.mulf %189, %190 : vector<1x128xf32>
    %192 = arith.addf %188, %191 : vector<1x128xf32>
    %c2_152 = arith.constant 2 : index
    %c0_153 = arith.constant 0 : index
    %193 = vector.load %arg12[%c2_152, %c0_153] : memref<8x128xf32, #tpu.memory_space<vmem>>, vector<1x128xf32>
    %c2_154 = arith.constant 2 : index
    %c0_155 = arith.constant 0 : index
    %194 = tpu.strided_load %arg24[%c2_154, %c0_155] {strides = array<i32: 4, 1>} : memref<8x128xf32, #tpu.memory_space<vmem>>, vector<1x128xf32>
    %195 = arith.mulf %193, %194 : vector<1x128xf32>
    %196 = arith.addf %192, %195 : vector<1x128xf32>
    %c3_156 = arith.constant 3 : index
    %c0_157 = arith.constant 0 : index
    %197 = vector.load %arg12[%c3_156, %c0_157] : memref<8x128xf32, #tpu.memory_space<vmem>>, vector<1x128xf32>
    %c3_158 = arith.constant 3 : index
    %c0_159 = arith.constant 0 : index
    %198 = tpu.strided_load %arg24[%c3_158, %c0_159] {strides = array<i32: 4, 1>} : memref<8x128xf32, #tpu.memory_space<vmem>>, vector<1x128xf32>
    %199 = arith.mulf %197, %198 : vector<1x128xf32>
    %200 = arith.addf %196, %199 : vector<1x128xf32>
    %c4_160 = arith.constant 4 : index
    %c0_161 = arith.constant 0 : index
    %201 = vector.load %arg12[%c4_160, %c0_161] : memref<8x128xf32, #tpu.memory_space<vmem>>, vector<1x128xf32>
    %c4_162 = arith.constant 4 : index
    %c0_163 = arith.constant 0 : index
    %202 = tpu.strided_load %arg24[%c4_162, %c0_163] {strides = array<i32: 4, 1>} : memref<8x128xf32, #tpu.memory_space<vmem>>, vector<1x128xf32>
    %203 = arith.mulf %201, %202 : vector<1x128xf32>
    %204 = arith.addf %200, %203 : vector<1x128xf32>
    %c5_164 = arith.constant 5 : index
    %c0_165 = arith.constant 0 : index
    %205 = vector.load %arg12[%c5_164, %c0_165] : memref<8x128xf32, #tpu.memory_space<vmem>>, vector<1x128xf32>
    %c5_166 = arith.constant 5 : index
    %c0_167 = arith.constant 0 : index
    %206 = tpu.strided_load %arg24[%c5_166, %c0_167] {strides = array<i32: 4, 1>} : memref<8x128xf32, #tpu.memory_space<vmem>>, vector<1x128xf32>
    %207 = arith.mulf %205, %206 : vector<1x128xf32>
    %208 = arith.addf %204, %207 : vector<1x128xf32>
    %c6_168 = arith.constant 6 : index
    %c0_169 = arith.constant 0 : index
    %209 = vector.load %arg12[%c6_168, %c0_169] : memref<8x128xf32, #tpu.memory_space<vmem>>, vector<1x128xf32>
    %c6_170 = arith.constant 6 : index
    %c0_171 = arith.constant 0 : index
    %210 = tpu.strided_load %arg24[%c6_170, %c0_171] {strides = array<i32: 4, 1>} : memref<8x128xf32, #tpu.memory_space<vmem>>, vector<1x128xf32>
    %211 = arith.mulf %209, %210 : vector<1x128xf32>
    %212 = arith.addf %208, %211 : vector<1x128xf32>
    %c7_172 = arith.constant 7 : index
    %c0_173 = arith.constant 0 : index
    %213 = vector.load %arg12[%c7_172, %c0_173] : memref<8x128xf32, #tpu.memory_space<vmem>>, vector<1x128xf32>
    %c7_174 = arith.constant 7 : index
    %c0_175 = arith.constant 0 : index
    %214 = tpu.strided_load %arg24[%c7_174, %c0_175] {strides = array<i32: 4, 1>} : memref<8x128xf32, #tpu.memory_space<vmem>>, vector<1x128xf32>
    %215 = arith.mulf %213, %214 : vector<1x128xf32>
    %216 = arith.addf %212, %215 : vector<1x128xf32>
    %c0_176 = arith.constant 0 : index
    %c0_177 = arith.constant 0 : index
    %217 = vector.load %arg13[%c0_176, %c0_177] : memref<128x256xf32, #tpu.memory_space<vmem>>, vector<128x256xf32>
    %cst_178 = arith.constant dense<0.000000e+00> : vector<1x256xf32>
    %218 = tpu.matmul %216, %217, %cst_178 {dimension_numbers = #tpu.dot_dimension_numbers<[1], [0], [0], [1], [0, 0, 1, 1], [], []>} : vector<1x128xf32>, vector<128x256xf32>, vector<1x256xf32> -> vector<1x256xf32>
    %c0_179 = arith.constant 0 : index
    %c0_180 = arith.constant 0 : index
    %219 = vector.load %arg14[%c0_179, %c0_180] : memref<3x256xf32, #tpu.memory_space<vmem>>, vector<1x256xf32>
    %220 = arith.addf %218, %219 : vector<1x256xf32>
    %cst_181 = arith.constant 0.000000e+00 : f32
    %221 = vector.broadcast %cst_181 : f32 to vector<1x256xf32>
    %222 = arith.cmpf oge, %220, %221 : vector<1x256xf32>
    %223 = vector.broadcast %185 : f32 to vector<1x256xf32>
    %224 = arith.mulf %223, %220 : vector<1x256xf32>
    %225 = arith.select %222, %220, %224 : vector<1x256xi1>, vector<1x256xf32>
    %c1_182 = arith.constant 1 : index
    %c0_183 = arith.constant 0 : index
    %226 = vector.load %arg14[%c1_182, %c0_183] : memref<3x256xf32, #tpu.memory_space<vmem>>, vector<1x256xf32>
    %227 = arith.mulf %225, %226 : vector<1x256xf32>
    %c2_184 = arith.constant 2 : index
    %c0_185 = arith.constant 0 : index
    %228 = vector.load %arg14[%c2_184, %c0_185] : memref<3x256xf32, #tpu.memory_space<vmem>>, vector<1x256xf32>
    %229 = arith.addf %227, %228 : vector<1x256xf32>
    %c0_186 = arith.constant 0 : index
    %c0_187 = arith.constant 0 : index
    %230 = vector.load %arg15[%c0_186, %c0_187] : memref<256x64xf32, #tpu.memory_space<vmem>>, vector<256x64xf32>
    %cst_188 = arith.constant dense<0.000000e+00> : vector<1x64xf32>
    %231 = tpu.matmul %229, %230, %cst_188 {dimension_numbers = #tpu.dot_dimension_numbers<[1], [0], [0], [1], [0, 0, 1, 1], [], []>} : vector<1x256xf32>, vector<256x64xf32>, vector<1x64xf32> -> vector<1x64xf32>
    %c0_189 = arith.constant 0 : index
    %c0_190 = arith.constant 0 : index
    %232 = vector.load %arg16[%c0_189, %c0_190] : memref<3x64xf32, #tpu.memory_space<vmem>>, vector<1x64xf32>
    %233 = arith.addf %231, %232 : vector<1x64xf32>
    %c4_191 = arith.constant 4 : index
    %234 = memref.load %arg2[%c4_191] : memref<5xf32, #tpu.memory_space<smem>>
    %cst_192 = arith.constant 0.000000e+00 : f32
    %235 = vector.broadcast %cst_192 : f32 to vector<1x64xf32>
    %236 = arith.cmpf oge, %233, %235 : vector<1x64xf32>
    %237 = vector.broadcast %234 : f32 to vector<1x64xf32>
    %238 = arith.mulf %237, %233 : vector<1x64xf32>
    %239 = arith.select %236, %233, %238 : vector<1x64xi1>, vector<1x64xf32>
    %c1_193 = arith.constant 1 : index
    %c0_194 = arith.constant 0 : index
    %240 = vector.load %arg16[%c1_193, %c0_194] : memref<3x64xf32, #tpu.memory_space<vmem>>, vector<1x64xf32>
    %241 = arith.mulf %239, %240 : vector<1x64xf32>
    %c2_195 = arith.constant 2 : index
    %c0_196 = arith.constant 0 : index
    %242 = vector.load %arg16[%c2_195, %c0_196] : memref<3x64xf32, #tpu.memory_space<vmem>>, vector<1x64xf32>
    %243 = arith.addf %241, %242 : vector<1x64xf32>
    %c0_197 = arith.constant 0 : index
    %c0_198 = arith.constant 0 : index
    %244 = vector.load %arg17[%c0_197, %c0_198] : memref<64x64xf32, #tpu.memory_space<vmem>>, vector<64x64xf32>
    %cst_199 = arith.constant dense<0.000000e+00> : vector<1x64xf32>
    %245 = tpu.matmul %243, %244, %cst_199 {dimension_numbers = #tpu.dot_dimension_numbers<[1], [0], [0], [1], [0, 0, 1, 1], [], []>} : vector<1x64xf32>, vector<64x64xf32>, vector<1x64xf32> -> vector<1x64xf32>
    %c0_200 = arith.constant 0 : index
    %c0_201 = arith.constant 0 : index
    %246 = vector.load %arg18[%c0_200, %c0_201] : memref<1x64xf32, #tpu.memory_space<vmem>>, vector<1x64xf32>
    %247 = arith.addf %245, %246 : vector<1x64xf32>
    %cst_202 = arith.constant 0.000000e+00 : f32
    %248 = vector.broadcast %cst_202 : f32 to vector<1x64xf32>
    %249 = arith.maximumf %247, %248 : vector<1x64xf32>
    %c0_203 = arith.constant 0 : index
    %c0_204 = arith.constant 0 : index
    %250 = vector.load %arg19[%c0_203, %c0_204] : memref<64x5xf32, #tpu.memory_space<vmem>>, vector<64x5xf32>
    %cst_205 = arith.constant dense<0.000000e+00> : vector<1x5xf32>
    %251 = tpu.matmul %249, %250, %cst_205 {dimension_numbers = #tpu.dot_dimension_numbers<[1], [0], [0], [1], [0, 0, 1, 1], [], []>} : vector<1x64xf32>, vector<64x5xf32>, vector<1x5xf32> -> vector<1x5xf32>
    %c0_206 = arith.constant 0 : index
    %c0_207 = arith.constant 0 : index
    %252 = vector.load %arg20[%c0_206, %c0_207] : memref<1x5xf32, #tpu.memory_space<vmem>>, vector<1x5xf32>
    %253 = arith.addf %251, %252 : vector<1x5xf32>
    %c0_208 = arith.constant 0 : index
    %c0_209 = arith.constant 0 : index
    %c0_210 = arith.constant 0 : index
    %254 = vector.load %arg21[%c0_208, %c0_209, %c0_210] : memref<1x1x5xf32, #tpu.memory_space<vmem>>, vector<1x1x5xf32>
    %255 = vector.shape_cast %254 : vector<1x1x5xf32> to vector<1x5xf32>
    %256 = vector.shape_cast %253 : vector<1x5xf32> to vector<1x1x5xf32>
    tpu.vector_store %arg21[%c0_208, %c0_209, %c0_210], %256 {strides = array<i32>} : memref<1x1x5xf32, #tpu.memory_space<vmem>>, vector<1x1x5xf32>,
    return
  }
  func.func @transform_0(%arg0: i32) -> (i32, i32, i32) {
    %c0_i32 = arith.constant 0 : i32
    %c0_i32_0 = arith.constant 0 : i32
    %c0_i32_1 = arith.constant 0 : i32
    return %arg0, %c0_i32, %c0_i32_0 : i32, i32, i32
  }
  func.func @transform_1(%arg0: i32) -> i32 {
    %c0_i32 = arith.constant 0 : i32
    %c0_i32_0 = arith.constant 0 : i32
    return %c0_i32 : i32
  }
  func.func @transform_2(%arg0: i32) -> (i32, i32) {
    %c0_i32 = arith.constant 0 : i32
    %c0_i32_0 = arith.constant 0 : i32
    %c0_i32_1 = arith.constant 0 : i32
    return %c0_i32, %c0_i32_0 : i32, i32
  }
  func.func @transform_3(%arg0: i32) -> (i32, i32) {
    %c0_i32 = arith.constant 0 : i32
    %c0_i32_0 = arith.constant 0 : i32
    %c0_i32_1 = arith.constant 0 : i32
    return %c0_i32, %c0_i32_0 : i32, i32
  }
  func.func @transform_4(%arg0: i32) -> (i32, i32) {
    %c0_i32 = arith.constant 0 : i32
    %c0_i32_0 = arith.constant 0 : i32
    %c0_i32_1 = arith.constant 0 : i32
    return %c0_i32, %c0_i32_0 : i32, i32
  }
  func.func @transform_5(%arg0: i32) -> (i32, i32) {
    %c0_i32 = arith.constant 0 : i32
    %c0_i32_0 = arith.constant 0 : i32
    %c0_i32_1 = arith.constant 0 : i32
    return %c0_i32, %c0_i32_0 : i32, i32
  }
  func.func @transform_6(%arg0: i32) -> (i32, i32) {
    %c0_i32 = arith.constant 0 : i32
    %c0_i32_0 = arith.constant 0 : i32
    %c0_i32_1 = arith.constant 0 : i32
    return %c0_i32, %c0_i32_0 : i32, i32
  }
  func.func @transform_7(%arg0: i32) -> (i32, i32) {
    %c0_i32 = arith.constant 0 : i32
    %c0_i32_0 = arith.constant 0 : i32
    %c0_i32_1 = arith.constant 0 : i32
    return %c0_i32, %c0_i32_0 : i32, i32
  }
  func.func @transform_8(%arg0: i32) -> (i32, i32) {
    %c0_i32 = arith.constant 0 : i32
    %c0_i32_0 = arith.constant 0 : i32
    %c0_i32_1 = arith.constant 0 : i32
    return %c0_i32, %c0_i32_0 : i32, i32
  }
  func.func @transform_9(%arg0: i32) -> (i32, i32) {
    %c0_i32 = arith.constant 0 : i32
    %c0_i32_0 = arith.constant 0 : i32
    %c0_i32_1 = arith.constant 0 : i32
    return %c0_i32, %c0_i32_0 : i32, i32
  }
  func.func @transform_10(%arg0: i32) -> (i32, i32) {
    %c0_i32 = arith.constant 0 : i32
    %c0_i32_0 = arith.constant 0 : i32
    %c0_i32_1 = arith.constant 0 : i32
    return %c0_i32, %c0_i32_0 : i32, i32
  }
  func.func @transform_11(%arg0: i32) -> (i32, i32) {
    %c0_i32 = arith.constant 0 : i32
    %c0_i32_0 = arith.constant 0 : i32
    %c0_i32_1 = arith.constant 0 : i32
    return %c0_i32, %c0_i32_0 : i32, i32
  }
  func.func @transform_12(%arg0: i32) -> (i32, i32) {
    %c0_i32 = arith.constant 0 : i32
    %c0_i32_0 = arith.constant 0 : i32
    %c0_i32_1 = arith.constant 0 : i32
    return %c0_i32, %c0_i32_0 : i32, i32
  }
  func.func @transform_13(%arg0: i32) -> (i32, i32) {
    %c0_i32 = arith.constant 0 : i32
    %c0_i32_0 = arith.constant 0 : i32
    %c0_i32_1 = arith.constant 0 : i32
    return %c0_i32, %c0_i32_0 : i32, i32
  }
  func.func @transform_14(%arg0: i32) -> (i32, i32) {
    %c0_i32 = arith.constant 0 : i32
    %c0_i32_0 = arith.constant 0 : i32
    %c0_i32_1 = arith.constant 0 : i32
    return %c0_i32, %c0_i32_0 : i32, i32
  }
  func.func @transform_15(%arg0: i32) -> (i32, i32) {
    %c0_i32 = arith.constant 0 : i32
    %c0_i32_0 = arith.constant 0 : i32
    %c0_i32_1 = arith.constant 0 : i32
    return %c0_i32, %c0_i32_0 : i32, i32
  }
  func.func @transform_16(%arg0: i32) -> (i32, i32) {
    %c0_i32 = arith.constant 0 : i32
    %c0_i32_0 = arith.constant 0 : i32
    %c0_i32_1 = arith.constant 0 : i32
    return %c0_i32, %c0_i32_0 : i32, i32
  }
  func.func @transform_17(%arg0: i32) -> (i32, i32) {
    %c0_i32 = arith.constant 0 : i32
    %c0_i32_0 = arith.constant 0 : i32
    %c0_i32_1 = arith.constant 0 : i32
    return %c0_i32, %c0_i32_0 : i32, i32
  }
  func.func @transform_18(%arg0: i32) -> (i32, i32) {
    %c0_i32 = arith.constant 0 : i32
    %c0_i32_0 = arith.constant 0 : i32
    %c0_i32_1 = arith.constant 0 : i32
    return %c0_i32, %c0_i32_0 : i32, i32
  }
  func.func @transform_19(%arg0: i32) -> (i32, i32) {
    %c0_i32 = arith.constant 0 : i32
    %c0_i32_0 = arith.constant 0 : i32
    %c0_i32_1 = arith.constant 0 : i32
    return %c0_i32, %c0_i32_0 : i32, i32
  }
  func.func @transform_20(%arg0: i32) -> (i32, i32, i32) {
    %c0_i32 = arith.constant 0 : i32
    %c0_i32_0 = arith.constant 0 : i32
    %c0_i32_1 = arith.constant 0 : i32
    return %arg0, %c0_i32, %c0_i32_0 : i32, i32, i32
  }
}

</mosaic_0001>

<llo_original>
// kernel: tpu_custom_call.1
$region0: #{tpu_custom_call.1}
  #allocation0 [shape = 'u32[]', space=smem, size = 0x4, offset = 0x4, fixed_abs, tag = 'smem constant byte address 0x4 - core index']
  #allocation1 [shape = 'u32[72,128]{1,0:T(1,128)}', space=vmem, size = 0x9000, scoped, tag = 'internal scratch']
  #allocation2 [shape = 'f32[68,32]{1,0:T(8,128)}', space=vmem, size = 0x9000, scoped, tag = 'scratch operand']
  #allocation3 [shape = 'f32[20,64]{1,0:T(8,128)}', space=vmem, size = 0x3000, scoped, tag = 'scratch operand']
  #allocation4 [shape = 'f32[8,128]{1,0:T(8,128)}', space=vmem, size = 0x1000, scoped, tag = 'scratch operand']
  %s0 = inlined_call_operand.vmem [shape: f32[2,134,4], index: 0, kind: input, shape index: {}]
  %s1 = inlined_call_operand.vmem [shape: f32[5], index: 1, kind: input, shape index: {}]
  %s2 = inlined_call_operand.vmem [shape: f32[8,4], index: 2, kind: input, shape index: {}]
  %s3 = inlined_call_operand.vmem [shape: f32[4,32], index: 3, kind: input, shape index: {}]
  %s4 = inlined_call_operand.vmem [shape: f32[3,32], index: 4, kind: input, shape index: {}]
  %s5 = inlined_call_operand.vmem [shape: f32[8,32], index: 5, kind: input, shape index: {}]
  %s6 = inlined_call_operand.vmem [shape: f32[32,64], index: 6, kind: input, shape index: {}]
  %s7 = inlined_call_operand.vmem [shape: f32[3,64], index: 7, kind: input, shape index: {}]
  %s8 = inlined_call_operand.vmem [shape: f32[8,64], index: 8, kind: input, shape index: {}]
  %s9 = inlined_call_operand.vmem [shape: f32[64,128], index: 9, kind: input, shape index: {}]
  %s10 = inlined_call_operand.vmem [shape: f32[3,128], index: 10, kind: input, shape index: {}]
  %s11 = inlined_call_operand.vmem [shape: f32[8,128], index: 11, kind: input, shape index: {}]
  %s12 = inlined_call_operand.vmem [shape: f32[128,256], index: 12, kind: input, shape index: {}]
  %s13 = inlined_call_operand.vmem [shape: f32[3,256], index: 13, kind: input, shape index: {}]
  %s14 = inlined_call_operand.vmem [shape: f32[256,64], index: 14, kind: input, shape index: {}]
  %s15 = inlined_call_operand.vmem [shape: f32[3,64], index: 15, kind: input, shape index: {}]
  %s16 = inlined_call_operand.vmem [shape: f32[64,64], index: 16, kind: input, shape index: {}]
  %s17 = inlined_call_operand.vmem [shape: f32[1,64], index: 17, kind: input, shape index: {}]
  %s18 = inlined_call_operand.vmem [shape: f32[64,5], index: 18, kind: input, shape index: {}]
  %s19 = inlined_call_operand.vmem [shape: f32[1,5], index: 19, kind: input, shape index: {}]
  %s20 = inlined_call_operand.hbm [shape: f32[2,1,5], index: 20, kind: output, shape index: {}]
  %s21 = sld [smem:[#allocation0]]
  $region117: #{tpu_custom_call.1} parent=0
    _
  %s23 = ssub.s32 1, %s21
  %s24 = scalar_select 0, %s23, %s21
  $region1: #{tpu_custom_call.1} parent=0
    #allocation5 [shape = 'u8[512]{0}', space=smem, size = 0x200, scoped, tag = 'input window, operand 1, single buffered']
    #allocation6 [shape = 's32[2]{0}', space=sflag, size = 0x8, scoped, tag = 'scoped memory for tpu_custom_call.1']
    #allocation7 [shape = 's32[2]{0}', space=sflag, size = 0x8, scoped, tag = 'scoped memory for tpu_custom_call.1']
    #allocation8 [shape = 'u8[1024]{0}', space=vmem, size = 0x400, scoped, tag = 'output window, operand 0']
    %25 = vsyncpa [#allocation7], 0
    %26 = vsyncpa [#allocation6], 0
    %s27 = scalar_lea.sflag [#allocation6], 1
    %28 = vsyncpa %s27, 0
    loop: start=0, step=1, limit=4
    $region2: #{tpu_custom_call.1} parent=1 // loop_pre_header
      _
    $region3: #{tpu_custom_call.1} parent=1 // loop_header
      %s30 = sphi 0, %s34
      %p31 = scmp.ge.s32.totalorder %s30, 4
      %s40 = sphi 0, %s42
      %s43 = sphi 0, %s40
      %s44 = sphi 0, %s43
      %s60 = sphi 0, %s44
      %s64 = sphi 0, %s64
      %s66 = sphi 0, %s64
      %s67 = sphi 0, %s66
      %s81 = sphi 0, %s67
      %s85 = sphi 0, %s85
      %s87 = sphi 0, %s85
      %s88 = sphi 0, %s87
      %s102 = sphi 0, %s88
      %s106 = sphi 0, %s106
      %s108 = sphi 0, %s106
      %s109 = sphi 0, %s108
      %s123 = sphi 0, %s109
      %s127 = sphi 0, %s127
      %s129 = sphi 0, %s127
      %s130 = sphi 0, %s129
      %s144 = sphi 0, %s130
      %s148 = sphi 0, %s148
      %s150 = sphi 0, %s148
      %s151 = sphi 0, %s150
      %s165 = sphi 0, %s151
      %s169 = sphi 0, %s169
      %s171 = sphi 0, %s169
      %s172 = sphi 0, %s171
      %s186 = sphi 0, %s172
      %s190 = sphi 0, %s190
      %s192 = sphi 0, %s190
      %s193 = sphi 0, %s192
      %s207 = sphi 0, %s193
      %s211 = sphi 0, %s211
      %s213 = sphi 0, %s211
      %s214 = sphi 0, %s213
      %s228 = sphi 0, %s214
      %s232 = sphi 0, %s232
      %s234 = sphi 0, %s232
      %s235 = sphi 0, %s234
      %s249 = sphi 0, %s235
      %s253 = sphi 0, %s253
      %s255 = sphi 0, %s253
      %s256 = sphi 0, %s255
      %s270 = sphi 0, %s256
      %s274 = sphi 0, %s274
      %s276 = sphi 0, %s274
      %s277 = sphi 0, %s276
      %s291 = sphi 0, %s277
      %s295 = sphi 0, %s295
      %s297 = sphi 0, %s295
      %s298 = sphi 0, %s297
      %s312 = sphi 0, %s298
      %s316 = sphi 0, %s316
      %s318 = sphi 0, %s316
      %s319 = sphi 0, %s318
      %s333 = sphi 0, %s319
      %s337 = sphi 0, %s337
      %s339 = sphi 0, %s337
      %s340 = sphi 0, %s339
      %s354 = sphi 0, %s340
      %s358 = sphi 0, %s358
      %s360 = sphi 0, %s358
      %s361 = sphi 0, %s360
      %s375 = sphi 0, %s361
      %s379 = sphi 0, %s379
      %s381 = sphi 0, %s379
      %s382 = sphi 0, %s381
      %s396 = sphi 0, %s382
      %s400 = sphi 0, %s400
      %s402 = sphi 0, %s400
      %s403 = sphi 0, %s402
      %s417 = sphi 0, %s403
      %s421 = sphi 0, %s421
      %s423 = sphi 0, %s421
      %s424 = sphi 0, %s423
      %s438 = sphi 0, %s424
      %s442 = sphi 0, %s442
      %s444 = sphi 0, %s442
      %s445 = sphi 0, %s444
      %s459 = sphi 0, %s445
      %s465 = sphi 0, %s467
      %s468 = sphi 0, %s465
      %s469 = sphi 0, %s468
      %s485 = sphi 0, %s469
    $region4: #{tpu_custom_call.1} parent=1 // loop_header_branch
      %33 = sbr.rel (%p31) target = $region8
    $region5: #{tpu_custom_call.1} parent=1 // loop_body
      %s35 = ssub.s32 %s30, 1
      %s36 = ssub.s32 %s30, 2
      %s37 = sadd.s32 %s30, 1
      %s38 = ssub.s32 %s30, %s37
      %p39 = scmp.eq.s32.totalorder %s38, 0
      %s41 = sadd.s32 %s40, 1
      %s42 = scalar_select %p39, %s40, %s41
      %p45 = pneg %p39
      %p46 = scmp.eq.s32.totalorder %s30, 1
      %p47 = por %p45, %p46
      %p48 = scmp.ne.s32.totalorder %s40, %s43
      %p49 = scmp.eq.s32.totalorder %s30, 0
      %p50 = por %p48, %p49
      %p51 = scmp.ne.s32.totalorder %s40, %s43
      %p52 = scmp.eq.s32.totalorder %s35, 1
      %p53 = por %p51, %p52
      %p54 = scmp.ne.s32.totalorder %s43, %s44
      %p55 = scmp.eq.s32.totalorder %s35, 0
      %p56 = por %p54, %p55
      %p57 = scmp.ne.s32.totalorder %s43, %s44
      %p58 = scmp.eq.s32.totalorder %s36, 1
      %p59 = por %p57, %p58
      %p61 = scmp.ne.s32.totalorder %s44, %s60
      %p62 = scmp.eq.s32.totalorder %s36, 0
      %p63 = por %p61, %p62
      %s65 = sadd.s32 %s64, 1
      %p68 = scmp.eq.s32.totalorder %s30, 1
      %p69 = scmp.ne.s32.totalorder %s64, %s66
      %p70 = scmp.eq.s32.totalorder %s30, 0
      %p71 = por %p69, %p70
      %p72 = scmp.ne.s32.totalorder %s64, %s66
      %p73 = scmp.eq.s32.totalorder %s35, 1
      %p74 = por %p72, %p73
      %p75 = scmp.ne.s32.totalorder %s66, %s67
      %p76 = scmp.eq.s32.totalorder %s35, 0
      %p77 = por %p75, %p76
      %p78 = scmp.ne.s32.totalorder %s66, %s67
      %p79 = scmp.eq.s32.totalorder %s36, 1
      %p80 = por %p78, %p79
      %p82 = scmp.ne.s32.totalorder %s67, %s81
      %p83 = scmp.eq.s32.totalorder %s36, 0
      %p84 = por %p82, %p83
      %s86 = sadd.s32 %s85, 1
      %p89 = scmp.eq.s32.totalorder %s30, 1
      %p90 = scmp.ne.s32.totalorder %s85, %s87
      %p91 = scmp.eq.s32.totalorder %s30, 0
      %p92 = por %p90, %p91
      %p93 = scmp.ne.s32.totalorder %s85, %s87
      %p94 = scmp.eq.s32.totalorder %s35, 1
      %p95 = por %p93, %p94
      %p96 = scmp.ne.s32.totalorder %s87, %s88
      %p97 = scmp.eq.s32.totalorder %s35, 0
      %p98 = por %p96, %p97
      %p99 = scmp.ne.s32.totalorder %s87, %s88
      %p100 = scmp.eq.s32.totalorder %s36, 1
      %p101 = por %p99, %p100
      %p103 = scmp.ne.s32.totalorder %s88, %s102
      %p104 = scmp.eq.s32.totalorder %s36, 0
      %p105 = por %p103, %p104
      %s107 = sadd.s32 %s106, 1
      %p110 = scmp.eq.s32.totalorder %s30, 1
      %p111 = scmp.ne.s32.totalorder %s106, %s108
      %p112 = scmp.eq.s32.totalorder %s30, 0
      %p113 = por %p111, %p112
      %p114 = scmp.ne.s32.totalorder %s106, %s108
      %p115 = scmp.eq.s32.totalorder %s35, 1
      %p116 = por %p114, %p115
      %p117 = scmp.ne.s32.totalorder %s108, %s109
      %p118 = scmp.eq.s32.totalorder %s35, 0
      %p119 = por %p117, %p118
      %p120 = scmp.ne.s32.totalorder %s108, %s109
      %p121 = scmp.eq.s32.totalorder %s36, 1
      %p122 = por %p120, %p121
      %p124 = scmp.ne.s32.totalorder %s109, %s123
      %p125 = scmp.eq.s32.totalorder %s36, 0
      %p126 = por %p124, %p125
      %s128 = sadd.s32 %s127, 1
      %p131 = scmp.eq.s32.totalorder %s30, 1
      %p132 = scmp.ne.s32.totalorder %s127, %s129
      %p133 = scmp.eq.s32.totalorder %s30, 0
      %p134 = por %p132, %p133
      %p135 = scmp.ne.s32.totalorder %s127, %s129
      %p136 = scmp.eq.s32.totalorder %s35, 1
      %p137 = por %p135, %p136
      %p138 = scmp.ne.s32.totalorder %s129, %s130
      %p139 = scmp.eq.s32.totalorder %s35, 0
      %p140 = por %p138, %p139
      %p141 = scmp.ne.s32.totalorder %s129, %s130
      %p142 = scmp.eq.s32.totalorder %s36, 1
      %p143 = por %p141, %p142
      %p145 = scmp.ne.s32.totalorder %s130, %s144
      %p146 = scmp.eq.s32.totalorder %s36, 0
      %p147 = por %p145, %p146
      %s149 = sadd.s32 %s148, 1
      %p152 = scmp.eq.s32.totalorder %s30, 1
      %p153 = scmp.ne.s32.totalorder %s148, %s150
      %p154 = scmp.eq.s32.totalorder %s30, 0
      %p155 = por %p153, %p154
      %p156 = scmp.ne.s32.totalorder %s148, %s150
      %p157 = scmp.eq.s32.totalorder %s35, 1
      %p158 = por %p156, %p157
      %p159 = scmp.ne.s32.totalorder %s150, %s151
      %p160 = scmp.eq.s32.totalorder %s35, 0
      %p161 = por %p159, %p160
      %p162 = scmp.ne.s32.totalorder %s150, %s151
      %p163 = scmp.eq.s32.totalorder %s36, 1
      %p164 = por %p162, %p163
      %p166 = scmp.ne.s32.totalorder %s151, %s165
      %p167 = scmp.eq.s32.totalorder %s36, 0
      %p168 = por %p166, %p167
      %s170 = sadd.s32 %s169, 1
      %p173 = scmp.eq.s32.totalorder %s30, 1
      %p174 = scmp.ne.s32.totalorder %s169, %s171
      %p175 = scmp.eq.s32.totalorder %s30, 0
      %p176 = por %p174, %p175
      %p177 = scmp.ne.s32.totalorder %s169, %s171
      %p178 = scmp.eq.s32.totalorder %s35, 1
      %p179 = por %p177, %p178
      %p180 = scmp.ne.s32.totalorder %s171, %s172
      %p181 = scmp.eq.s32.totalorder %s35, 0
      %p182 = por %p180, %p181
      %p183 = scmp.ne.s32.totalorder %s171, %s172
      %p184 = scmp.eq.s32.totalorder %s36, 1
      %p185 = por %p183, %p184
      %p187 = scmp.ne.s32.totalorder %s172, %s186
      %p188 = scmp.eq.s32.totalorder %s36, 0
      %p189 = por %p187, %p188
      %s191 = sadd.s32 %s190, 1
      %p194 = scmp.eq.s32.totalorder %s30, 1
      %p195 = scmp.ne.s32.totalorder %s190, %s192
      %p196 = scmp.eq.s32.totalorder %s30, 0
      %p197 = por %p195, %p196
      %p198 = scmp.ne.s32.totalorder %s190, %s192
      %p199 = scmp.eq.s32.totalorder %s35, 1
      %p200 = por %p198, %p199
      %p201 = scmp.ne.s32.totalorder %s192, %s193
      %p202 = scmp.eq.s32.totalorder %s35, 0
      %p203 = por %p201, %p202
      %p204 = scmp.ne.s32.totalorder %s192, %s193
      %p205 = scmp.eq.s32.totalorder %s36, 1
      %p206 = por %p204, %p205
      %p208 = scmp.ne.s32.totalorder %s193, %s207
      %p209 = scmp.eq.s32.totalorder %s36, 0
      %p210 = por %p208, %p209
      %s212 = sadd.s32 %s211, 1
      %p215 = scmp.eq.s32.totalorder %s30, 1
      %p216 = scmp.ne.s32.totalorder %s211, %s213
      %p217 = scmp.eq.s32.totalorder %s30, 0
      %p218 = por %p216, %p217
      %p219 = scmp.ne.s32.totalorder %s211, %s213
      %p220 = scmp.eq.s32.totalorder %s35, 1
      %p221 = por %p219, %p220
      %p222 = scmp.ne.s32.totalorder %s213, %s214
      %p223 = scmp.eq.s32.totalorder %s35, 0
      %p224 = por %p222, %p223
      %p225 = scmp.ne.s32.totalorder %s213, %s214
      %p226 = scmp.eq.s32.totalorder %s36, 1
      %p227 = por %p225, %p226
      %p229 = scmp.ne.s32.totalorder %s214, %s228
      %p230 = scmp.eq.s32.totalorder %s36, 0
      %p231 = por %p229, %p230
      %s233 = sadd.s32 %s232, 1
      %p236 = scmp.eq.s32.totalorder %s30, 1
      %p237 = scmp.ne.s32.totalorder %s232, %s234
      %p238 = scmp.eq.s32.totalorder %s30, 0
      %p239 = por %p237, %p238
      %p240 = scmp.ne.s32.totalorder %s232, %s234
      %p241 = scmp.eq.s32.totalorder %s35, 1
      %p242 = por %p240, %p241
      %p243 = scmp.ne.s32.totalorder %s234, %s235
      %p244 = scmp.eq.s32.totalorder %s35, 0
      %p245 = por %p243, %p244
      %p246 = scmp.ne.s32.totalorder %s234, %s235
      %p247 = scmp.eq.s32.totalorder %s36, 1
      %p248 = por %p246, %p247
      %p250 = scmp.ne.s32.totalorder %s235, %s249
      %p251 = scmp.eq.s32.totalorder %s36, 0
      %p252 = por %p250, %p251
      %s254 = sadd.s32 %s253, 1
      %p257 = scmp.eq.s32.totalorder %s30, 1
      %p258 = scmp.ne.s32.totalorder %s253, %s255
      %p259 = scmp.eq.s32.totalorder %s30, 0
      %p260 = por %p258, %p259
      %p261 = scmp.ne.s32.totalorder %s253, %s255
      %p262 = scmp.eq.s32.totalorder %s35, 1
      %p263 = por %p261, %p262
      %p264 = scmp.ne.s32.totalorder %s255, %s256
      %p265 = scmp.eq.s32.totalorder %s35, 0
      %p266 = por %p264, %p265
      %p267 = scmp.ne.s32.totalorder %s255, %s256
      %p268 = scmp.eq.s32.totalorder %s36, 1
      %p269 = por %p267, %p268
      %p271 = scmp.ne.s32.totalorder %s256, %s270
      %p272 = scmp.eq.s32.totalorder %s36, 0
      %p273 = por %p271, %p272
      %s275 = sadd.s32 %s274, 1
      %p278 = scmp.eq.s32.totalorder %s30, 1
      %p279 = scmp.ne.s32.totalorder %s274, %s276
      %p280 = scmp.eq.s32.totalorder %s30, 0
      %p281 = por %p279, %p280
      %p282 = scmp.ne.s32.totalorder %s274, %s276
      %p283 = scmp.eq.s32.totalorder %s35, 1
      %p284 = por %p282, %p283
      %p285 = scmp.ne.s32.totalorder %s276, %s277
      %p286 = scmp.eq.s32.totalorder %s35, 0
      %p287 = por %p285, %p286
      %p288 = scmp.ne.s32.totalorder %s276, %s277
      %p289 = scmp.eq.s32.totalorder %s36, 1
      %p290 = por %p288, %p289
      %p292 = scmp.ne.s32.totalorder %s277, %s291
      %p293 = scmp.eq.s32.totalorder %s36, 0
      %p294 = por %p292, %p293
      %s296 = sadd.s32 %s295, 1
      %p299 = scmp.eq.s32.totalorder %s30, 1
      %p300 = scmp.ne.s32.totalorder %s295, %s297
      %p301 = scmp.eq.s32.totalorder %s30, 0
      %p302 = por %p300, %p301
      %p303 = scmp.ne.s32.totalorder %s295, %s297
      %p304 = scmp.eq.s32.totalorder %s35, 1
      %p305 = por %p303, %p304
      %p306 = scmp.ne.s32.totalorder %s297, %s298
      %p307 = scmp.eq.s32.totalorder %s35, 0
      %p308 = por %p306, %p307
      %p309 = scmp.ne.s32.totalorder %s297, %s298
      %p310 = scmp.eq.s32.totalorder %s36, 1
      %p311 = por %p309, %p310
      %p313 = scmp.ne.s32.totalorder %s298, %s312
      %p314 = scmp.eq.s32.totalorder %s36, 0
      %p315 = por %p313, %p314
      %s317 = sadd.s32 %s316, 1
      %p320 = scmp.eq.s32.totalorder %s30, 1
      %p321 = scmp.ne.s32.totalorder %s316, %s318
      %p322 = scmp.eq.s32.totalorder %s30, 0
      %p323 = por %p321, %p322
      %p324 = scmp.ne.s32.totalorder %s316, %s318
      %p325 = scmp.eq.s32.totalorder %s35, 1
      %p326 = por %p324, %p325
      %p327 = scmp.ne.s32.totalorder %s318, %s319
      %p328 = scmp.eq.s32.totalorder %s35, 0
      %p329 = por %p327, %p328
      %p330 = scmp.ne.s32.totalorder %s318, %s319
      %p331 = scmp.eq.s32.totalorder %s36, 1
      %p332 = por %p330, %p331
      %p334 = scmp.ne.s32.totalorder %s319, %s333
      %p335 = scmp.eq.s32.totalorder %s36, 0
      %p336 = por %p334, %p335
      %s338 = sadd.s32 %s337, 1
      %p341 = scmp.eq.s32.totalorder %s30, 1
      %p342 = scmp.ne.s32.totalorder %s337, %s339
      %p343 = scmp.eq.s32.totalorder %s30, 0
      %p344 = por %p342, %p343
      %p345 = scmp.ne.s32.totalorder %s337, %s339
      %p346 = scmp.eq.s32.totalorder %s35, 1
      %p347 = por %p345, %p346
      %p348 = scmp.ne.s32.totalorder %s339, %s340
      %p349 = scmp.eq.s32.totalorder %s35, 0
      %p350 = por %p348, %p349
      %p351 = scmp.ne.s32.totalorder %s339, %s340
      %p352 = scmp.eq.s32.totalorder %s36, 1
      %p353 = por %p351, %p352
      %p355 = scmp.ne.s32.totalorder %s340, %s354
      %p356 = scmp.eq.s32.totalorder %s36, 0
      %p357 = por %p355, %p356
      %s359 = sadd.s32 %s358, 1
      %p362 = scmp.eq.s32.totalorder %s30, 1
      %p363 = scmp.ne.s32.totalorder %s358, %s360
      %p364 = scmp.eq.s32.totalorder %s30, 0
      %p365 = por %p363, %p364
      %p366 = scmp.ne.s32.totalorder %s358, %s360
      %p367 = scmp.eq.s32.totalorder %s35, 1
      %p368 = por %p366, %p367
      %p369 = scmp.ne.s32.totalorder %s360, %s361
      %p370 = scmp.eq.s32.totalorder %s35, 0
      %p371 = por %p369, %p370
      %p372 = scmp.ne.s32.totalorder %s360, %s361
      %p373 = scmp.eq.s32.totalorder %s36, 1
      %p374 = por %p372, %p373
      %p376 = scmp.ne.s32.totalorder %s361, %s375
      %p377 = scmp.eq.s32.totalorder %s36, 0
      %p378 = por %p376, %p377
      %s380 = sadd.s32 %s379, 1
      %p383 = scmp.eq.s32.totalorder %s30, 1
      %p384 = scmp.ne.s32.totalorder %s379, %s381
      %p385 = scmp.eq.s32.totalorder %s30, 0
      %p386 = por %p384, %p385
      %p387 = scmp.ne.s32.totalorder %s379, %s381
      %p388 = scmp.eq.s32.totalorder %s35, 1
      %p389 = por %p387, %p388
      %p390 = scmp.ne.s32.totalorder %s381, %s382
      %p391 = scmp.eq.s32.totalorder %s35, 0
      %p392 = por %p390, %p391
      %p393 = scmp.ne.s32.totalorder %s381, %s382
      %p394 = scmp.eq.s32.totalorder %s36, 1
      %p395 = por %p393, %p394
      %p397 = scmp.ne.s32.totalorder %s382, %s396
      %p398 = scmp.eq.s32.totalorder %s36, 0
      %p399 = por %p397, %p398
      %s401 = sadd.s32 %s400, 1
      %p404 = scmp.eq.s32.totalorder %s30, 1
      %p405 = scmp.ne.s32.totalorder %s400, %s402
      %p406 = scmp.eq.s32.totalorder %s30, 0
      %p407 = por %p405, %p406
      %p408 = scmp.ne.s32.totalorder %s400, %s402
      %p409 = scmp.eq.s32.totalorder %s35, 1
      %p410 = por %p408, %p409
      %p411 = scmp.ne.s32.totalorder %s402, %s403
      %p412 = scmp.eq.s32.totalorder %s35, 0
      %p413 = por %p411, %p412
      %p414 = scmp.ne.s32.totalorder %s402, %s403
      %p415 = scmp.eq.s32.totalorder %s36, 1
      %p416 = por %p414, %p415
      %p418 = scmp.ne.s32.totalorder %s403, %s417
      %p419 = scmp.eq.s32.totalorder %s36, 0
      %p420 = por %p418, %p419
      %s422 = sadd.s32 %s421, 1
      %p425 = scmp.eq.s32.totalorder %s30, 1
      %p426 = scmp.ne.s32.totalorder %s421, %s423
      %p427 = scmp.eq.s32.totalorder %s30, 0
      %p428 = por %p426, %p427
      %p429 = scmp.ne.s32.totalorder %s421, %s423
      %p430 = scmp.eq.s32.totalorder %s35, 1
      %p431 = por %p429, %p430
      %p432 = scmp.ne.s32.totalorder %s423, %s424
      %p433 = scmp.eq.s32.totalorder %s35, 0
      %p434 = por %p432, %p433
      %p435 = scmp.ne.s32.totalorder %s423, %s424
      %p436 = scmp.eq.s32.totalorder %s36, 1
      %p437 = por %p435, %p436
      %p439 = scmp.ne.s32.totalorder %s424, %s438
      %p440 = scmp.eq.s32.totalorder %s36, 0
      %p441 = por %p439, %p440
      %s443 = sadd.s32 %s442, 1
      %p446 = scmp.eq.s32.totalorder %s30, 1
      %p447 = scmp.ne.s32.totalorder %s442, %s444
      %p448 = scmp.eq.s32.totalorder %s30, 0
      %p449 = por %p447, %p448
      %p450 = scmp.ne.s32.totalorder %s442, %s444
      %p451 = scmp.eq.s32.totalorder %s35, 1
      %p452 = por %p450, %p451
      %p453 = scmp.ne.s32.totalorder %s444, %s445
      %p454 = scmp.eq.s32.totalorder %s35, 0
      %p455 = por %p453, %p454
      %p456 = scmp.ne.s32.totalorder %s444, %s445
      %p457 = scmp.eq.s32.totalorder %s36, 1
      %p458 = por %p456, %p457
      %p460 = scmp.ne.s32.totalorder %s445, %s459
      %p461 = scmp.eq.s32.totalorder %s36, 0
      %p462 = por %p460, %p461
      %s463 = ssub.s32 %s30, %s37
      %p464 = scmp.eq.s32.totalorder %s463, 0
      %s466 = sadd.s32 %s465, 1
      %s467 = scalar_select %p464, %s465, %s466
      %p470 = pneg %p464
      %p471 = scmp.eq.s32.totalorder %s30, 1
      %p472 = por %p470, %p471
      %p473 = scmp.ne.s32.totalorder %s465, %s468
      %p474 = scmp.eq.s32.totalorder %s30, 0
      %p475 = por %p473, %p474
      %p476 = scmp.ne.s32.totalorder %s465, %s468
      %p477 = scmp.eq.s32.totalorder %s35, 1
      %p478 = por %p476, %p477
      %p479 = scmp.ne.s32.totalorder %s468, %s469
      %p480 = scmp.eq.s32.totalorder %s35, 0
      %p481 = por %p479, %p480
      %p482 = scmp.ne.s32.totalorder %s468, %s469
      %p483 = scmp.eq.s32.totalorder %s36, 1
      %p484 = por %p482, %p483
      %p486 = scmp.ne.s32.totalorder %s469, %s485
      %p487 = scmp.eq.s32.totalorder %s36, 0
      %p488 = por %p486, %p487
      %p489 = scmp.le.s32.totalorder 1, %s30
      %p490 = scmp.lt.s32.totalorder %s30, 3
      %p491 = pnand %p489, %p490
      %p492 = pneg %p491
      // Predicated region
      $region9: #{tpu_custom_call.1} parent=5 // pred_check
        _
      $region10: #{tpu_custom_call.1} parent=5 // pred_check_branch
        %494 = sbr.rel (%p491) target = $region12
      $region11: #{tpu_custom_call.1} parent=5 // pred_region
        %s495 = ssub.s32 %s30, 1
        // Predicated region
        $region13: #{tpu_custom_call.1} parent=11 // pred_check
          %p496 = pneg %p77
        $region14: #{tpu_custom_call.1} parent=11 // pred_check_branch
          %498 = sbr.rel (%p496) target = $region16
        $region15: #{tpu_custom_call.1} parent=11 // pred_region
          %500 = vsyncadd [#allocation7], 0
          %s502 = sshll.u32 %s1, 4
          %s503 = int_to_ptr.vmem [resolvable:$true] %s502
          %505 = dma.vmem_to_smem %s503, 16, [#allocation5], [#allocation7]
        $region16: #{tpu_custom_call.1} parent=11 // pred_fallthru
          _
        // Predicated region
        $region17: #{tpu_custom_call.1} parent=11 // pred_check
          %p506 = pneg %p98
        $region18: #{tpu_custom_call.1} parent=11 // pred_check_branch
          %508 = sbr.rel (%p506) target = $region20
        $region19: #{tpu_custom_call.1} parent=11 // pred_region
          _
        $region20: #{tpu_custom_call.1} parent=11 // pred_fallthru
          _
        // Predicated region
        $region21: #{tpu_custom_call.1} parent=11 // pred_check
          %p509 = pneg %p119
        $region22: #{tpu_custom_call.1} parent=11 // pred_check_branch
          %511 = sbr.rel (%p509) target = $region24
        $region23: #{tpu_custom_call.1} parent=11 // pred_region
          _
        $region24: #{tpu_custom_call.1} parent=11 // pred_fallthru
          _
        // Predicated region
        $region25: #{tpu_custom_call.1} parent=11 // pred_check
          %p512 = pneg %p140
        $region26: #{tpu_custom_call.1} parent=11 // pred_check_branch
          %514 = sbr.rel (%p512) target = $region28
        $region27: #{tpu_custom_call.1} parent=11 // pred_region
          _
        $region28: #{tpu_custom_call.1} parent=11 // pred_fallthru
          _
        // Predicated region
        $region29: #{tpu_custom_call.1} parent=11 // pred_check
          %p515 = pneg %p161
        $region30: #{tpu_custom_call.1} parent=11 // pred_check_branch
          %517 = sbr.rel (%p515) target = $region32
        $region31: #{tpu_custom_call.1} parent=11 // pred_region
          _
        $region32: #{tpu_custom_call.1} parent=11 // pred_fallthru
          _
        // Predicated region
        $region33: #{tpu_custom_call.1} parent=11 // pred_check
          %p518 = pneg %p182
        $region34: #{tpu_custom_call.1} parent=11 // pred_check_branch
          %520 = sbr.rel (%p518) target = $region36
        $region35: #{tpu_custom_call.1} parent=11 // pred_region
          _
        $region36: #{tpu_custom_call.1} parent=11 // pred_fallthru
          _
        // Predicated region
        $region37: #{tpu_custom_call.1} parent=11 // pred_check
          %p521 = pneg %p203
        $region38: #{tpu_custom_call.1} parent=11 // pred_check_branch
          %523 = sbr.rel (%p521) target = $region40
        $region39: #{tpu_custom_call.1} parent=11 // pred_region
          _
        $region40: #{tpu_custom_call.1} parent=11 // pred_fallthru
          _
        // Predicated region
        $region41: #{tpu_custom_call.1} parent=11 // pred_check
          %p524 = pneg %p224
        $region42: #{tpu_custom_call.1} parent=11 // pred_check_branch
          %526 = sbr.rel (%p524) target = $region44
        $region43: #{tpu_custom_call.1} parent=11 // pred_region
          _
        $region44: #{tpu_custom_call.1} parent=11 // pred_fallthru
          _
        // Predicated region
        $region45: #{tpu_custom_call.1} parent=11 // pred_check
          %p527 = pneg %p245
        $region46: #{tpu_custom_call.1} parent=11 // pred_check_branch
          %529 = sbr.rel (%p527) target = $region48
        $region47: #{tpu_custom_call.1} parent=11 // pred_region
          _
        $region48: #{tpu_custom_call.1} parent=11 // pred_fallthru
          _
        // Predicated region
        $region49: #{tpu_custom_call.1} parent=11 // pred_check
          %p530 = pneg %p266
        $region50: #{tpu_custom_call.1} parent=11 // pred_check_branch
          %532 = sbr.rel (%p530) target = $region52
        $region51: #{tpu_custom_call.1} parent=11 // pred_region
          _
        $region52: #{tpu_custom_call.1} parent=11 // pred_fallthru
          _
        // Predicated region
        $region53: #{tpu_custom_call.1} parent=11 // pred_check
          %p533 = pneg %p287
        $region54: #{tpu_custom_call.1} parent=11 // pred_check_branch
          %535 = sbr.rel (%p533) target = $region56
        $region55: #{tpu_custom_call.1} parent=11 // pred_region
          _
        $region56: #{tpu_custom_call.1} parent=11 // pred_fallthru
          _
        // Predicated region
        $region57: #{tpu_custom_call.1} parent=11 // pred_check
          %p536 = pneg %p308
        $region58: #{tpu_custom_call.1} parent=11 // pred_check_branch
          %538 = sbr.rel (%p536) target = $region60
        $region59: #{tpu_custom_call.1} parent=11 // pred_region
          _
        $region60: #{tpu_custom_call.1} parent=11 // pred_fallthru
          _
        // Predicated region
        $region61: #{tpu_custom_call.1} parent=11 // pred_check
          %p539 = pneg %p329
        $region62: #{tpu_custom_call.1} parent=11 // pred_check_branch
          %541 = sbr.rel (%p539) target = $region64
        $region63: #{tpu_custom_call.1} parent=11 // pred_region
          _
        $region64: #{tpu_custom_call.1} parent=11 // pred_fallthru
          _
        // Predicated region
        $region65: #{tpu_custom_call.1} parent=11 // pred_check
          %p542 = pneg %p350
        $region66: #{tpu_custom_call.1} parent=11 // pred_check_branch
          %544 = sbr.rel (%p542) target = $region68
        $region67: #{tpu_custom_call.1} parent=11 // pred_region
          _
        $region68: #{tpu_custom_call.1} parent=11 // pred_fallthru
          _
        // Predicated region
        $region69: #{tpu_custom_call.1} parent=11 // pred_check
          %p545 = pneg %p371
        $region70: #{tpu_custom_call.1} parent=11 // pred_check_branch
          %547 = sbr.rel (%p545) target = $region72
        $region71: #{tpu_custom_call.1} parent=11 // pred_region
          _
        $region72: #{tpu_custom_call.1} parent=11 // pred_fallthru
          _
        // Predicated region
        $region73: #{tpu_custom_call.1} parent=11 // pred_check
          %p548 = pneg %p392
        $region74: #{tpu_custom_call.1} parent=11 // pred_check_branch
          %550 = sbr.rel (%p548) target = $region76
        $region75: #{tpu_custom_call.1} parent=11 // pred_region
          _
        $region76: #{tpu_custom_call.1} parent=11 // pred_fallthru
          _
        // Predicated region
        $region77: #{tpu_custom_call.1} parent=11 // pred_check
          %p551 = pneg %p413
        $region78: #{tpu_custom_call.1} parent=11 // pred_check_branch
          %553 = sbr.rel (%p551) target = $region80
        $region79: #{tpu_custom_call.1} parent=11 // pred_region
          _
        $region80: #{tpu_custom_call.1} parent=11 // pred_fallthru
          _
        // Predicated region
        $region81: #{tpu_custom_call.1} parent=11 // pred_check
          %p554 = pneg %p434
        $region82: #{tpu_custom_call.1} parent=11 // pred_check_branch
          %556 = sbr.rel (%p554) target = $region84
        $region83: #{tpu_custom_call.1} parent=11 // pred_region
          _
        $region84: #{tpu_custom_call.1} parent=11 // pred_fallthru
          _
        // Predicated region
        $region85: #{tpu_custom_call.1} parent=11 // pred_check
          %p557 = pneg %p455
        $region86: #{tpu_custom_call.1} parent=11 // pred_check_branch
          %559 = sbr.rel (%p557) target = $region88
        $region87: #{tpu_custom_call.1} parent=11 // pred_region
          _
        $region88: #{tpu_custom_call.1} parent=11 // pred_fallthru
          _
      $region12: #{tpu_custom_call.1} parent=5 // pred_fallthru
        _
      %p560 = scmp.lt.s32.totalorder %s30, 2
      // Predicated region
      $region89: #{tpu_custom_call.1} parent=5 // pred_check
        %p561 = pneg %p560
      $region90: #{tpu_custom_call.1} parent=5 // pred_check_branch
        %563 = sbr.rel (%p561) target = $region92
      $region91: #{tpu_custom_call.1} parent=5 // pred_region
        // Predicated region
        $region93: #{tpu_custom_call.1} parent=91 // pred_check
          %p564 = pneg %p50
        $region94: #{tpu_custom_call.1} parent=91 // pred_check_branch
          %566 = sbr.rel (%p564) target = $region96
        $region95: #{tpu_custom_call.1} parent=91 // pred_region
          %p567 = scmp.lt.s32.totalorder %s30, 1
          %s568 = scalar_select %p567, %s30, 1
          %s569 = smul.addr %s568, 17
          %s570 = smul.addr %s569, 8
          %s571 = scalar_lea.vmem %s0, %s570
        $region96: #{tpu_custom_call.1} parent=91 // pred_fallthru
          _
      $region92: #{tpu_custom_call.1} parent=5 // pred_fallthru
        _
      %p572 = scmp.le.s32.totalorder 1, %s30
      %p573 = scmp.lt.s32.totalorder %s30, 3
      %p574 = pnand %p572, %p573
      %p575 = pneg %p574
      // Predicated region
      $region97: #{tpu_custom_call.1} parent=5 // pred_check
        _
      $region98: #{tpu_custom_call.1} parent=5 // pred_check_branch
        %577 = sbr.rel (%p574) target = $region100
      $region99: #{tpu_custom_call.1} parent=5 // pred_region
        %s578 = ssub.s32 %s30, 1
        // Predicated region
        $region101: #{tpu_custom_call.1} parent=99 // pred_check
          %p579 = pneg %p77
        $region102: #{tpu_custom_call.1} parent=99 // pred_check_branch
          %581 = sbr.rel (%p579) target = $region104
        $region103: #{tpu_custom_call.1} parent=99 // pred_region
          %583 = dma.done [#allocation7], 16
        $region104: #{tpu_custom_call.1} parent=99 // pred_fallthru
          _
        %584 = sfence
        %p585 = scmp.lt.s32.totalorder %s35, 1
        %s586 = scalar_select %p585, %s35, 1
        %s587 = smul.addr %s586, 17
        %s588 = smul.addr %s587, 8
        %s589 = scalar_lea.vmem %s0, %s588
        %p590 = pneg %p56
        %p591 = pneg %p53
        %p592 = pneg %p77
        %p593 = pneg %p74
        %p594 = pneg %p98
        %p595 = pneg %p95
        %p596 = pneg %p119
        %p597 = pneg %p116
        %p598 = pneg %p140
        %p599 = pneg %p137
        %p600 = pneg %p161
        %p601 = pneg %p158
        %p602 = pneg %p182
        %p603 = pneg %p179
        %p604 = pneg %p203
        %p605 = pneg %p200
        %p606 = pneg %p224
        %p607 = pneg %p221
        %p608 = pneg %p245
        %p609 = pneg %p242
        %p610 = pneg %p266
        %p611 = pneg %p263
        %p612 = pneg %p287
        %p613 = pneg %p284
        %p614 = pneg %p308
        %p615 = pneg %p305
        %p616 = pneg %p329
        %p617 = pneg %p326
        %p618 = pneg %p350
        %p619 = pneg %p347
        %p620 = pneg %p371
        %p621 = pneg %p368
        %p622 = pneg %p392
        %p623 = pneg %p389
        %p624 = pneg %p413
        %p625 = pneg %p410
        %p626 = pneg %p434
        %p627 = pneg %p431
        %p628 = pneg %p455
        %p629 = pneg %p452
        %p630 = pneg %p481
        %p631 = pneg %p478
        %s632 = sand.u32 %s468, 1
        %s633 = scalar_lea.sflag [#allocation6], %s632
        %s634 = sand.u32 %s468, 1
        %s635 = scalar_lea.vmem [#allocation8], %s634
        %p636 = scmp.lt.s32.totalorder %s35, 1
        %s637 = scalar_select %p636, %s35, 1
        %s638 = smul.addr %s637, 17
        %s639 = smul.addr %s638, 8
        %s640 = scalar_lea.vmem %s0, %s639
        %s641 = sld [smem:[#allocation5]]
        %v642 = vld [vmem:[%s2] sm:$0x1]
        %v643 = vld [vmem:[%s640] ss:$2 sm:$0xff]
        %s644 = scalar_lea.vmem %s640, 16
        %v645 = vld [vmem:[%s644] ss:$2 sm:$0xff]
        %s646 = scalar_lea.vmem %s640, 32
        %v647 = vld [vmem:[%s646] ss:$2 sm:$0xff]
        %s648 = scalar_lea.vmem %s640, 48
        %v649 = vld [vmem:[%s648] ss:$2 sm:$0xff]
        %s650 = scalar_lea.vmem %s640, 64
        %v651 = vld [vmem:[%s650] ss:$2 sm:$0xff]
        %s652 = scalar_lea.vmem %s640, 80
        %v653 = vld [vmem:[%s652] ss:$2 sm:$0xff]
        %s654 = scalar_lea.vmem %s640, 96
        %v655 = vld [vmem:[%s654] ss:$2 sm:$0xff]
        %s656 = scalar_lea.vmem %s640, 112
        %v657 = vld [vmem:[%s656] ss:$2 sm:$0xff]
        %v658 = vperm.slane %v642, 0
        %v659 = vmul.f32 %v658, %v643
        %v660 = vmul.f32 %v658, %v645
        %v661 = vmul.f32 %v658, %v647
        %v662 = vmul.f32 %v658, %v649
        %v663 = vmul.f32 %v658, %v651
        %v664 = vmul.f32 %v658, %v653
        %v665 = vmul.f32 %v658, %v655
        %v666 = vmul.f32 %v658, %v657
        %v667 = vld [vmem:[%s2 + $0x1] sm:$0x1]
        %s668 = scalar_lea.vmem %s640, 1
        %v669 = vld [vmem:[%s668] ss:$2 sm:$0xff]
        %s670 = scalar_lea.vmem %s640, 17
        %v671 = vld [vmem:[%s670] ss:$2 sm:$0xff]
        %s672 = scalar_lea.vmem %s640, 33
        %v673 = vld [vmem:[%s672] ss:$2 sm:$0xff]
        %s674 = scalar_lea.vmem %s640, 49
        %v675 = vld [vmem:[%s674] ss:$2 sm:$0xff]
        %s676 = scalar_lea.vmem %s640, 65
        %v677 = vld [vmem:[%s676] ss:$2 sm:$0xff]
        %s678 = scalar_lea.vmem %s640, 81
        %v679 = vld [vmem:[%s678] ss:$2 sm:$0xff]
        %s680 = scalar_lea.vmem %s640, 97
        %v681 = vld [vmem:[%s680] ss:$2 sm:$0xff]
        %s682 = scalar_lea.vmem %s640, 113
        %v683 = vld [vmem:[%s682] ss:$2 sm:$0xff]
        %v684 = vperm.slane %v667, 0
        %v685 = vmul.f32 %v684, %v669
        %v686 = vmul.f32 %v684, %v671
        %v687 = vmul.f32 %v684, %v673
        %v688 = vmul.f32 %v684, %v675
        %v689 = vmul.f32 %v684, %v677
        %v690 = vmul.f32 %v684, %v679
        %v691 = vmul.f32 %v684, %v681
        %v692 = vmul.f32 %v684, %v683
        %v693 = vadd.f32 %v659, %v685
        %v694 = vadd.f32 %v660, %v686
        %v695 = vadd.f32 %v661, %v687
        %v696 = vadd.f32 %v662, %v688
        %v697 = vadd.f32 %v663, %v689
        %v698 = vadd.f32 %v664, %v690
        %v699 = vadd.f32 %v665, %v691
        %v700 = vadd.f32 %v666, %v692
        %v701 = vld [vmem:[%s2 + $0x2] sm:$0x1]
        %s702 = scalar_lea.vmem %s640, 2
        %v703 = vld [vmem:[%s702] ss:$2 sm:$0xff]
        %s704 = scalar_lea.vmem %s640, 18
        %v705 = vld [vmem:[%s704] ss:$2 sm:$0xff]
        %s706 = scalar_lea.vmem %s640, 34
        %v707 = vld [vmem:[%s706] ss:$2 sm:$0xff]
        %s708 = scalar_lea.vmem %s640, 50
        %v709 = vld [vmem:[%s708] ss:$2 sm:$0xff]
        %s710 = scalar_lea.vmem %s640, 66
        %v711 = vld [vmem:[%s710] ss:$2 sm:$0xff]
        %s712 = scalar_lea.vmem %s640, 82
        %v713 = vld [vmem:[%s712] ss:$2 sm:$0xff]
        %s714 = scalar_lea.vmem %s640, 98
        %v715 = vld [vmem:[%s714] ss:$2 sm:$0xff]
        %s716 = scalar_lea.vmem %s640, 114
        %v717 = vld [vmem:[%s716] ss:$2 sm:$0xff]
        %v718 = vperm.slane %v701, 0
        %v719 = vmul.f32 %v718, %v703
        %v720 = vmul.f32 %v718, %v705
        %v721 = vmul.f32 %v718, %v707
        %v722 = vmul.f32 %v718, %v709
        %v723 = vmul.f32 %v718, %v711
        %v724 = vmul.f32 %v718, %v713
        %v725 = vmul.f32 %v718, %v715
        %v726 = vmul.f32 %v718, %v717
        %v727 = vadd.f32 %v693, %v719
        %v728 = vadd.f32 %v694, %v720
        %v729 = vadd.f32 %v695, %v721
        %v730 = vadd.f32 %v696, %v722
        %v731 = vadd.f32 %v697, %v723
        %v732 = vadd.f32 %v698, %v724
        %v733 = vadd.f32 %v699, %v725
        %v734 = vadd.f32 %v700, %v726
        %v735 = vld [vmem:[%s2 + $0x3] sm:$0x1]
        %s736 = scalar_lea.vmem %s640, 3
        %v737 = vld [vmem:[%s736] ss:$2 sm:$0xff]
        %s738 = scalar_lea.vmem %s640, 19
        %v739 = vld [vmem:[%s738] ss:$2 sm:$0xff]
        %s740 = scalar_lea.vmem %s640, 35
        %v741 = vld [vmem:[%s740] ss:$2 sm:$0xff]
        %s742 = scalar_lea.vmem %s640, 51
        %v743 = vld [vmem:[%s742] ss:$2 sm:$0xff]
        %s744 = scalar_lea.vmem %s640, 67
        %v745 = vld [vmem:[%s744] ss:$2 sm:$0xff]
        %s746 = scalar_lea.vmem %s640, 83
        %v747 = vld [vmem:[%s746] ss:$2 sm:$0xff]
        %s748 = scalar_lea.vmem %s640, 99
        %v749 = vld [vmem:[%s748] ss:$2 sm:$0xff]
        %s750 = scalar_lea.vmem %s640, 115
        %v751 = vld [vmem:[%s750] ss:$2 sm:$0xff]
        %v752 = vperm.slane %v735, 0
        %v753 = vmul.f32 %v752, %v737
        %v754 = vmul.f32 %v752, %v739
        %v755 = vmul.f32 %v752, %v741
        %v756 = vmul.f32 %v752, %v743
        %v757 = vmul.f32 %v752, %v745
        %v758 = vmul.f32 %v752, %v747
        %v759 = vmul.f32 %v752, %v749
        %v760 = vmul.f32 %v752, %v751
        %v761 = vadd.f32 %v727, %v753
        %v762 = vadd.f32 %v728, %v754
        %v763 = vadd.f32 %v729, %v755
        %v764 = vadd.f32 %v730, %v756
        %v765 = vadd.f32 %v731, %v757
        %v766 = vadd.f32 %v732, %v758
        %v767 = vadd.f32 %v733, %v759
        %v768 = vadd.f32 %v734, %v760
        %v769 = vld [vmem:[%s2 + $0x4] sm:$0x1]
        %s770 = scalar_lea.vmem %s640, 4
        %v771 = vld [vmem:[%s770] ss:$2 sm:$0xff]
        %s772 = scalar_lea.vmem %s640, 20
        %v773 = vld [vmem:[%s772] ss:$2 sm:$0xff]
        %s774 = scalar_lea.vmem %s640, 36
        %v775 = vld [vmem:[%s774] ss:$2 sm:$0xff]
        %s776 = scalar_lea.vmem %s640, 52
        %v777 = vld [vmem:[%s776] ss:$2 sm:$0xff]
        %s778 = scalar_lea.vmem %s640, 68
        %v779 = vld [vmem:[%s778] ss:$2 sm:$0xff]
        %s780 = scalar_lea.vmem %s640, 84
        %v781 = vld [vmem:[%s780] ss:$2 sm:$0xff]
        %s782 = scalar_lea.vmem %s640, 100
        %v783 = vld [vmem:[%s782] ss:$2 sm:$0xff]
        %s784 = scalar_lea.vmem %s640, 116
        %v785 = vld [vmem:[%s784] ss:$2 sm:$0xff]
        %v786 = vperm.slane %v769, 0
        %v787 = vmul.f32 %v786, %v771
        %v788 = vmul.f32 %v786, %v773
        %v789 = vmul.f32 %v786, %v775
        %v790 = vmul.f32 %v786, %v777
        %v791 = vmul.f32 %v786, %v779
        %v792 = vmul.f32 %v786, %v781
        %v793 = vmul.f32 %v786, %v783
        %v794 = vmul.f32 %v786, %v785
        %v795 = vadd.f32 %v761, %v787
        %v796 = vadd.f32 %v762, %v788
        %v797 = vadd.f32 %v763, %v789
        %v798 = vadd.f32 %v764, %v790
        %v799 = vadd.f32 %v765, %v791
        %v800 = vadd.f32 %v766, %v792
        %v801 = vadd.f32 %v767, %v793
        %v802 = vadd.f32 %v768, %v794
        %v803 = vld [vmem:[%s2 + $0x5] sm:$0x1]
        %s804 = scalar_lea.vmem %s640, 5
        %v805 = vld [vmem:[%s804] ss:$2 sm:$0xff]
        %s806 = scalar_lea.vmem %s640, 21
        %v807 = vld [vmem:[%s806] ss:$2 sm:$0xff]
        %s808 = scalar_lea.vmem %s640, 37
        %v809 = vld [vmem:[%s808] ss:$2 sm:$0xff]
        %s810 = scalar_lea.vmem %s640, 53
        %v811 = vld [vmem:[%s810] ss:$2 sm:$0xff]
        %s812 = scalar_lea.vmem %s640, 69
        %v813 = vld [vmem:[%s812] ss:$2 sm:$0xff]
        %s814 = scalar_lea.vmem %s640, 85
        %v815 = vld [vmem:[%s814] ss:$2 sm:$0xff]
        %s816 = scalar_lea.vmem %s640, 101
        %v817 = vld [vmem:[%s816] ss:$2 sm:$0xff]
        %s818 = scalar_lea.vmem %s640, 117
        %v819 = vld [vmem:[%s818] ss:$2 sm:$0xff]
        %v820 = vperm.slane %v803, 0
        %v821 = vmul.f32 %v820, %v805
        %v822 = vmul.f32 %v820, %v807
        %v823 = vmul.f32 %v820, %v809
        %v824 = vmul.f32 %v820, %v811
        %v825 = vmul.f32 %v820, %v813
        %v826 = vmul.f32 %v820, %v815
        %v827 = vmul.f32 %v820, %v817
        %v828 = vmul.f32 %v820, %v819
        %v829 = vadd.f32 %v795, %v821
        %v830 = vadd.f32 %v796, %v822
        %v831 = vadd.f32 %v797, %v823
        %v832 = vadd.f32 %v798, %v824
        %v833 = vadd.f32 %v799, %v825
        %v834 = vadd.f32 %v800, %v826
        %v835 = vadd.f32 %v801, %v827
        %v836 = vadd.f32 %v802, %v828
        %v837 = vld [vmem:[%s2 + $0x6] sm:$0x1]
        %s838 = scalar_lea.vmem %s640, 6
        %v839 = vld [vmem:[%s838] ss:$2 sm:$0xff]
        %s840 = scalar_lea.vmem %s640, 22
        %v841 = vld [vmem:[%s840] ss:$2 sm:$0xff]
        %s842 = scalar_lea.vmem %s640, 38
        %v843 = vld [vmem:[%s842] ss:$2 sm:$0xff]
        %s844 = scalar_lea.vmem %s640, 54
        %v845 = vld [vmem:[%s844] ss:$2 sm:$0xff]
        %s846 = scalar_lea.vmem %s640, 70
        %v847 = vld [vmem:[%s846] ss:$2 sm:$0xff]
        %s848 = scalar_lea.vmem %s640, 86
        %v849 = vld [vmem:[%s848] ss:$2 sm:$0xff]
        %s850 = scalar_lea.vmem %s640, 102
        %v851 = vld [vmem:[%s850] ss:$2 sm:$0xff]
        %s852 = scalar_lea.vmem %s640, 118
        %v853 = vld [vmem:[%s852] ss:$2 sm:$0xff]
        %v854 = vperm.slane %v837, 0
        %v855 = vmul.f32 %v854, %v839
        %v856 = vmul.f32 %v854, %v841
        %v857 = vmul.f32 %v854, %v843
        %v858 = vmul.f32 %v854, %v845
        %v859 = vmul.f32 %v854, %v847
        %v860 = vmul.f32 %v854, %v849
        %v861 = vmul.f32 %v854, %v851
        %v862 = vmul.f32 %v854, %v853
        %v863 = vadd.f32 %v829, %v855
        %v864 = vadd.f32 %v830, %v856
        %v865 = vadd.f32 %v831, %v857
        %v866 = vadd.f32 %v832, %v858
        %v867 = vadd.f32 %v833, %v859
        %v868 = vadd.f32 %v834, %v860
        %v869 = vadd.f32 %v835, %v861
        %v870 = vadd.f32 %v836, %v862
        %v871 = vld [vmem:[%s2 + $0x7] sm:$0x1]
        %s872 = scalar_lea.vmem %s640, 7
        %v873 = vld [vmem:[%s872] ss:$2 sm:$0xff]
        %s874 = scalar_lea.vmem %s640, 23
        %v875 = vld [vmem:[%s874] ss:$2 sm:$0xff]
        %s876 = scalar_lea.vmem %s640, 39
        %v877 = vld [vmem:[%s876] ss:$2 sm:$0xff]
        %s878 = scalar_lea.vmem %s640, 55
        %v879 = vld [vmem:[%s878] ss:$2 sm:$0xff]
        %s880 = scalar_lea.vmem %s640, 71
        %v881 = vld [vmem:[%s880] ss:$2 sm:$0xff]
        %s882 = scalar_lea.vmem %s640, 87
        %v883 = vld [vmem:[%s882] ss:$2 sm:$0xff]
        %s884 = scalar_lea.vmem %s640, 103
        %v885 = vld [vmem:[%s884] ss:$2 sm:$0xff]
        %s886 = scalar_lea.vmem %s640, 119
        %v887 = vld [vmem:[%s886] ss:$2 sm:$0xff]
        %v888 = vperm.slane %v871, 0
        %v889 = vmul.f32 %v888, %v873
        %v890 = vmul.f32 %v888, %v875
        %v891 = vmul.f32 %v888, %v877
        %v892 = vmul.f32 %v888, %v879
        %v893 = vmul.f32 %v888, %v881
        %v894 = vmul.f32 %v888, %v883
        %v895 = vmul.f32 %v888, %v885
        %v896 = vmul.f32 %v888, %v887
        %v897 = vadd.f32 %v863, %v889
        %v898 = vadd.f32 %v864, %v890
        %v899 = vadd.f32 %v865, %v891
        %v900 = vadd.f32 %v866, %v892
        %v901 = vadd.f32 %v867, %v893
        %v902 = vadd.f32 %v868, %v894
        %v903 = vadd.f32 %v869, %v895
        %v904 = vadd.f32 %v870, %v896
        %v905 = vld [vmem:[%s3] sm:$0xf]
        %v906 = vld [vmem:[%s4] sm:$0x1]
        %v907 = vperm.slane %v906, 0
        %vm908 = vcmask 31744
        %v910 = vsel %vm908, %v897, 0
        %v913 = vsel %vm908, %v898, 0
        %v916 = vsel %vm908, %v899, 0
        %v919 = vsel %vm908, %v900, 0
        %v922 = vsel %vm908, %v901, 0
        %v925 = vsel %vm908, %v902, 0
        %v928 = vsel %vm908, %v903, 0
        %v931 = vsel %vm908, %v904, 0
        %vm933 = vcmask 1043456
        %v935 = vsel %vm933, %v905, 0
        %937 = vmatpush.msra.mxu0 0.0
        %938 = vmatpush.msra.mxu0 0.0
        %939 = vmatpush.msra.mxu0 0.0
        %940 = vmatpush.msra.mxu0 0.0
        %941 = vmatpush.msra.mxu0 0.0
        %942 = vmatpush.msra.mxu0 0.0
        %943 = vmatpush.msra.mxu0 0.0
        %944 = vmatpush.msra.mxu0 0.0
        %945 = vmatpush.msra.mxu0 0.0
        %946 = vmatpush.msra.mxu0 0.0
        %947 = vmatpush.msra.mxu0 0.0
        %948 = vmatpush.msra.mxu0 0.0
        %949 = vmatpush.msra.mxu0 0.0
        %950 = vmatpush.msra.mxu0 0.0
        %951 = vmatpush.msra.mxu0 0.0
        %952 = vmatpush.msra.mxu0 %v935
        %953 = vmatmul.f32.gmra.mxu0 %v910
        %v954 = vpop.f32.mrf.mxu0
        %v955 = vadd.f32 %v907, %v954
        %956 = vmatmul.f32.gmra.mxu0 %v913
        %v957 = vpop.f32.mrf.mxu0
        %v958 = vadd.f32 %v907, %v957
        %959 = vmatmul.f32.gmra.mxu0 %v916
        %v960 = vpop.f32.mrf.mxu0
        %v961 = vadd.f32 %v907, %v960
        %962 = vmatmul.f32.gmra.mxu0 %v919
        %v963 = vpop.f32.mrf.mxu0
        %v964 = vadd.f32 %v907, %v963
        %965 = vmatmul.f32.gmra.mxu0 %v922
        %v966 = vpop.f32.mrf.mxu0
        %v967 = vadd.f32 %v907, %v966
        %968 = vmatmul.f32.gmra.mxu0 %v925
        %v969 = vpop.f32.mrf.mxu0
        %v970 = vadd.f32 %v907, %v969
        %971 = vmatmul.f32.gmra.mxu0 %v928
        %v972 = vpop.f32.mrf.mxu0
        %v973 = vadd.f32 %v907, %v972
        %974 = vmatmul.f32.gmra.mxu0 %v931
        %v975 = vpop.f32.mrf.mxu0
        %v976 = vadd.f32 %v907, %v975
        %977 = vdwg.mxu0
        %vm978 = vcmp.ge.f32.partialorder %v955, 0.0
        %vm979 = vcmp.ge.f32.partialorder %v958, 0.0
        %vm980 = vcmp.ge.f32.partialorder %v961, 0.0
        %vm981 = vcmp.ge.f32.partialorder %v964, 0.0
        %vm982 = vcmp.ge.f32.partialorder %v967, 0.0
        %vm983 = vcmp.ge.f32.partialorder %v970, 0.0
        %vm984 = vcmp.ge.f32.partialorder %v973, 0.0
        %vm985 = vcmp.ge.f32.partialorder %v976, 0.0
        %v986 = vstv %s641
        %v987 = vmul.f32 %v986, %v955
        %v988 = vmul.f32 %v986, %v958
        %v989 = vmul.f32 %v986, %v961
        %v990 = vmul.f32 %v986, %v964
        %v991 = vmul.f32 %v986, %v967
        %v992 = vmul.f32 %v986, %v970
        %v993 = vmul.f32 %v986, %v973
        %v994 = vmul.f32 %v986, %v976
        %v995 = vsel %vm978, %v955, %v987
        %v996 = vsel %vm979, %v958, %v988
        %v997 = vsel %vm980, %v961, %v989
        %v998 = vsel %vm981, %v964, %v990
        %v999 = vsel %vm982, %v967, %v991
        %v1000 = vsel %vm983, %v970, %v992
        %v1001 = vsel %vm984, %v973, %v993
        %v1002 = vsel %vm985, %v976, %v994
        %v1003 = vld [vmem:[%s4 + $0x1] sm:$0x1]
        %v1004 = vperm.slane %v1003, 0
        %v1005 = vmul.f32 %v995, %v1004
        %v1006 = vmul.f32 %v996, %v1004
        %v1007 = vmul.f32 %v997, %v1004
        %v1008 = vmul.f32 %v998, %v1004
        %v1009 = vmul.f32 %v999, %v1004
        %v1010 = vmul.f32 %v1000, %v1004
        %v1011 = vmul.f32 %v1001, %v1004
        %v1012 = vmul.f32 %v1002, %v1004
        %v1013 = vld [vmem:[%s4 + $0x2] sm:$0x1]
        %v1014 = vperm.slane %v1013, 0
        %v1015 = vadd.f32 %v1005, %v1014
        %v1016 = vadd.f32 %v1006, %v1014
        %v1017 = vadd.f32 %v1007, %v1014
        %v1018 = vadd.f32 %v1008, %v1014
        %v1019 = vadd.f32 %v1009, %v1014
        %v1020 = vadd.f32 %v1010, %v1014
        %v1021 = vadd.f32 %v1011, %v1014
        %v1022 = vadd.f32 %v1012, %v1014
        %vm1023 = vcmask 261120
        %1024 = vst.msk [vmem:[#allocation2] sm:$0xff] %vm1023, 0.0
        %1025 = vst.msk [vmem:[#allocation2 + $0x8] sm:$0xff] %vm1023, 0.0
        %1026 = vst.msk [vmem:[#allocation2 + $0x10] sm:$0xff] %vm1023, 0.0
        %1027 = vst.msk [vmem:[#allocation2 + $0x18] sm:$0xff] %vm1023, 0.0
        %1028 = vst.msk [vmem:[#allocation2 + $0x20] sm:$0xff] %vm1023, 0.0
        %1029 = vst.msk [vmem:[#allocation2 + $0x28] sm:$0xff] %vm1023, 0.0
        %1030 = vst.msk [vmem:[#allocation2 + $0x30] sm:$0xff] %vm1023, 0.0
        %1031 = vst.msk [vmem:[#allocation2 + $0x38] sm:$0xff] %vm1023, 0.0
        %vm1032 = vcmask 257024
        %1033 = vst.msk [vmem:[#allocation2 + $0x40] sm:$0xf] %vm1032, 0.0
        %1034 = vst.msk [vmem:[#allocation2 + $0x2] sm:$0xff] %vm1023, %v1015
        %1035 = vst.msk [vmem:[#allocation2 + $0xa] sm:$0xff] %vm1023, %v1016
        %1036 = vst.msk [vmem:[#allocation2 + $0x12] sm:$0xff] %vm1023, %v1017
        %1037 = vst.msk [vmem:[#allocation2 + $0x1a] sm:$0xff] %vm1023, %v1018
        %1038 = vst.msk [vmem:[#allocation2 + $0x22] sm:$0xff] %vm1023, %v1019
        %1039 = vst.msk [vmem:[#allocation2 + $0x2a] sm:$0xff] %vm1023, %v1020
        %1040 = vst.msk [vmem:[#allocation2 + $0x32] sm:$0xff] %vm1023, %v1021
        %1041 = vst.msk [vmem:[#allocation2 + $0x3a] sm:$0xff] %vm1023, %v1022
        %s1042 = sld [smem:[#allocation5 + $0x1]]
        %v1043 = vld [vmem:[%s5] sm:$0x1]
        %v1044 = vld [vmem:[#allocation2] ss:$4 sm:$0xff]
        %s1045 = scalar_lea.vmem [#allocation2], 32
        %v1046 = vld [vmem:[%s1045] ss:$4 sm:$0xff]
        %v1047 = vperm.slane %v1043, 0
        %v1048 = vmul.f32 %v1047, %v1044
        %v1049 = vmul.f32 %v1047, %v1046
        %v1050 = vld [vmem:[%s5 + $0x1] sm:$0x1]
        %s1051 = scalar_lea.vmem [#allocation2], 1
        %v1052 = vld [vmem:[%s1051] ss:$4 sm:$0xff]
        %s1053 = scalar_lea.vmem [#allocation2], 33
        %v1054 = vld [vmem:[%s1053] ss:$4 sm:$0xff]
        %v1055 = vperm.slane %v1050, 0
        %v1056 = vmul.f32 %v1055, %v1052
        %v1057 = vmul.f32 %v1055, %v1054
        %v1058 = vadd.f32 %v1048, %v1056
        %v1059 = vadd.f32 %v1049, %v1057
        %v1060 = vld [vmem:[%s5 + $0x2] sm:$0x1]
        %s1061 = scalar_lea.vmem [#allocation2], 2
        %v1062 = vld [vmem:[%s1061] ss:$4 sm:$0xff]
        %s1063 = scalar_lea.vmem [#allocation2], 34
        %v1064 = vld [vmem:[%s1063] ss:$4 sm:$0xff]
        %v1065 = vperm.slane %v1060, 0
        %v1066 = vmul.f32 %v1065, %v1062
        %v1067 = vmul.f32 %v1065, %v1064
        %v1068 = vadd.f32 %v1058, %v1066
        %v1069 = vadd.f32 %v1059, %v1067
        %v1070 = vld [vmem:[%s5 + $0x3] sm:$0x1]
        %s1071 = scalar_lea.vmem [#allocation2], 3
        %v1072 = vld [vmem:[%s1071] ss:$4 sm:$0xff]
        %s1073 = scalar_lea.vmem [#allocation2], 35
        %v1074 = vld [vmem:[%s1073] ss:$4 sm:$0xff]
        %v1075 = vperm.slane %v1070, 0
        %v1076 = vmul.f32 %v1075, %v1072
        %v1077 = vmul.f32 %v1075, %v1074
        %v1078 = vadd.f32 %v1068, %v1076
        %v1079 = vadd.f32 %v1069, %v1077
        %v1080 = vld [vmem:[%s5 + $0x4] sm:$0x1]
        %s1081 = scalar_lea.vmem [#allocation2], 4
        %v1082 = vld [vmem:[%s1081] ss:$4 sm:$0xff]
        %s1083 = scalar_lea.vmem [#allocation2], 36
        %v1084 = vld [vmem:[%s1083] ss:$4 sm:$0xff]
        %v1085 = vperm.slane %v1080, 0
        %v1086 = vmul.f32 %v1085, %v1082
        %v1087 = vmul.f32 %v1085, %v1084
        %v1088 = vadd.f32 %v1078, %v1086
        %v1089 = vadd.f32 %v1079, %v1087
        %v1090 = vld [vmem:[%s5 + $0x5] sm:$0x1]
        %s1091 = scalar_lea.vmem [#allocation2], 5
        %v1092 = vld [vmem:[%s1091] ss:$4 sm:$0xff]
        %s1093 = scalar_lea.vmem [#allocation2], 37
        %v1094 = vld [vmem:[%s1093] ss:$4 sm:$0xff]
        %v1095 = vperm.slane %v1090, 0
        %v1096 = vmul.f32 %v1095, %v1092
        %v1097 = vmul.f32 %v1095, %v1094
        %v1098 = vadd.f32 %v1088, %v1096
        %v1099 = vadd.f32 %v1089, %v1097
        %v1100 = vld [vmem:[%s5 + $0x6] sm:$0x1]
        %s1101 = scalar_lea.vmem [#allocation2], 6
        %v1102 = vld [vmem:[%s1101] ss:$4 sm:$0xff]
        %s1103 = scalar_lea.vmem [#allocation2], 38
        %v1104 = vld [vmem:[%s1103] ss:$4 sm:$0xff]
        %v1105 = vperm.slane %v1100, 0
        %v1106 = vmul.f32 %v1105, %v1102
        %v1107 = vmul.f32 %v1105, %v1104
        %v1108 = vadd.f32 %v1098, %v1106
        %v1109 = vadd.f32 %v1099, %v1107
        %v1110 = vld [vmem:[%s5 + $0x7] sm:$0x1]
        %s1111 = scalar_lea.vmem [#allocation2], 7
        %v1112 = vld [vmem:[%s1111] ss:$4 sm:$0xff]
        %s1113 = scalar_lea.vmem [#allocation2], 39
        %v1114 = vld [vmem:[%s1113] ss:$4 sm:$0xff]
        %v1115 = vperm.slane %v1110, 0
        %v1116 = vmul.f32 %v1115, %v1112
        %v1117 = vmul.f32 %v1115, %v1114
        %v1118 = vadd.f32 %v1108, %v1116
        %v1119 = vadd.f32 %v1109, %v1117
        %v1120 = vld [vmem:[%s6] sm:$0xff]
        %v1121 = vld [vmem:[%s6 + $0x8] sm:$0xff]
        %v1122 = vld [vmem:[%s6 + $0x10] sm:$0xff]
        %v1123 = vld [vmem:[%s6 + $0x18] sm:$0xff]
        %v1124 = vld [vmem:[%s7] sm:$0x1]
        %v1125 = vperm.slane %v1124, 0
        %v1127 = vsel %vm1023, %v1118, 0
        %v1130 = vsel %vm1023, %v1119, 0
        %1132 = vmatpush.msra.mxu0 0.0
        %1133 = vmatpush.msra.mxu0 0.0
        %1134 = vmatpush.msra.mxu0 0.0
        %1135 = vmatpush.msra.mxu0 0.0
        %1136 = vmatpush.msra.mxu0 0.0
        %1137 = vmatpush.msra.mxu0 0.0
        %1138 = vmatpush.msra.mxu0 0.0
        %1139 = vmatpush.msra.mxu0 0.0
        %1140 = vmatpush.msra.mxu0 0.0
        %1141 = vmatpush.msra.mxu0 0.0
        %1142 = vmatpush.msra.mxu0 0.0
        %1143 = vmatpush.msra.mxu0 0.0
        %1144 = vmatpush.msra.mxu0 %v1123
        %1145 = vmatpush.msra.mxu0 %v1122
        %1146 = vmatpush.msra.mxu0 %v1121
        %1147 = vmatpush.msra.mxu0 %v1120
        %1148 = vmatmul.f32.gmra.mxu0 %v1127
        %v1149 = vpop.f32.mrf.mxu0
        %v1150 = vadd.f32 %v1125, %v1149
        %1151 = vmatmul.f32.gmra.mxu0 %v1130
        %v1152 = vpop.f32.mrf.mxu0
        %v1153 = vadd.f32 %v1125, %v1152
        %1154 = vdwg.mxu0
        %vm1155 = vcmp.ge.f32.partialorder %v1150, 0.0
        %vm1156 = vcmp.ge.f32.partialorder %v1153, 0.0
        %v1157 = vstv %s1042
        %v1158 = vmul.f32 %v1157, %v1150
        %v1159 = vmul.f32 %v1157, %v1153
        %v1160 = vsel %vm1155, %v1150, %v1158
        %v1161 = vsel %vm1156, %v1153, %v1159
        %v1162 = vld [vmem:[%s7 + $0x1] sm:$0x1]
        %v1163 = vperm.slane %v1162, 0
        %v1164 = vmul.f32 %v1160, %v1163
        %v1165 = vmul.f32 %v1161, %v1163
        %v1166 = vld [vmem:[%s7 + $0x2] sm:$0x1]
        %v1167 = vperm.slane %v1166, 0
        %v1168 = vadd.f32 %v1164, %v1167
        %v1169 = vadd.f32 %v1165, %v1167
        %vm1170 = vcmask 523264
        %1171 = vst.msk [vmem:[#allocation3] sm:$0xff] %vm1170, 0.0
        %1172 = vst.msk [vmem:[#allocation3 + $0x8] sm:$0xff] %vm1170, 0.0
        %vm1173 = vcmask 519168
        %1174 = vst.msk [vmem:[#allocation3 + $0x10] sm:$0xf] %vm1173, 0.0
        %1175 = vst.msk [vmem:[#allocation3 + $0x2] sm:$0xff] %vm1170, %v1168
        %1176 = vst.msk [vmem:[#allocation3 + $0xa] sm:$0xff] %vm1170, %v1169
        %s1177 = sld [smem:[#allocation5 + $0x2]]
        %v1178 = vld [vmem:[%s8] sm:$0x1]
        %v1179 = vld [vmem:[#allocation3] ss:$4 sm:$0xf]
        %v1180 = vperm.slane %v1178, 0
        %v1181 = vmul.f32 %v1180, %v1179
        %v1182 = vld [vmem:[%s8 + $0x1] sm:$0x1]
        %s1183 = scalar_lea.vmem [#allocation3], 1
        %v1184 = vld [vmem:[%s1183] ss:$4 sm:$0xf]
        %v1185 = vperm.slane %v1182, 0
        %v1186 = vmul.f32 %v1185, %v1184
        %v1187 = vadd.f32 %v1181, %v1186
        %v1188 = vld [vmem:[%s8 + $0x2] sm:$0x1]
        %s1189 = scalar_lea.vmem [#allocation3], 2
        %v1190 = vld [vmem:[%s1189] ss:$4 sm:$0xf]
        %v1191 = vperm.slane %v1188, 0
        %v1192 = vmul.f32 %v1191, %v1190
        %v1193 = vadd.f32 %v1187, %v1192
        %v1194 = vld [vmem:[%s8 + $0x3] sm:$0x1]
        %s1195 = scalar_lea.vmem [#allocation3], 3
        %v1196 = vld [vmem:[%s1195] ss:$4 sm:$0xf]
        %v1197 = vperm.slane %v1194, 0
        %v1198 = vmul.f32 %v1197, %v1196
        %v1199 = vadd.f32 %v1193, %v1198
        %v1200 = vld [vmem:[%s8 + $0x4] sm:$0x1]
        %s1201 = scalar_lea.vmem [#allocation3], 4
        %v1202 = vld [vmem:[%s1201] ss:$4 sm:$0xf]
        %v1203 = vperm.slane %v1200, 0
        %v1204 = vmul.f32 %v1203, %v1202
        %v1205 = vadd.f32 %v1199, %v1204
        %v1206 = vld [vmem:[%s8 + $0x5] sm:$0x1]
        %s1207 = scalar_lea.vmem [#allocation3], 5
        %v1208 = vld [vmem:[%s1207] ss:$4 sm:$0xf]
        %v1209 = vperm.slane %v1206, 0
        %v1210 = vmul.f32 %v1209, %v1208
        %v1211 = vadd.f32 %v1205, %v1210
        %v1212 = vld [vmem:[%s8 + $0x6] sm:$0x1]
        %s1213 = scalar_lea.vmem [#allocation3], 6
        %v1214 = vld [vmem:[%s1213] ss:$4 sm:$0xf]
        %v1215 = vperm.slane %v1212, 0
        %v1216 = vmul.f32 %v1215, %v1214
        %v1217 = vadd.f32 %v1211, %v1216
        %v1218 = vld [vmem:[%s8 + $0x7] sm:$0x1]
        %s1219 = scalar_lea.vmem [#allocation3], 7
        %v1220 = vld [vmem:[%s1219] ss:$4 sm:$0xf]
        %v1221 = vperm.slane %v1218, 0
        %v1222 = vmul.f32 %v1221, %v1220
        %v1223 = vadd.f32 %v1217, %v1222
        %v1224 = vld [vmem:[%s9] sm:$0xff]
        %v1225 = vld [vmem:[%s9 + $0x8] sm:$0xff]
        %v1226 = vld [vmem:[%s9 + $0x10] sm:$0xff]
        %v1227 = vld [vmem:[%s9 + $0x18] sm:$0xff]
        %v1228 = vld [vmem:[%s9 + $0x20] sm:$0xff]
        %v1229 = vld [vmem:[%s9 + $0x28] sm:$0xff]
        %v1230 = vld [vmem:[%s9 + $0x30] sm:$0xff]
        %v1231 = vld [vmem:[%s9 + $0x38] sm:$0xff]
        %v1232 = vld [vmem:[%s10] sm:$0x1]
        %v1233 = vperm.slane %v1232, 0
        %v1235 = vsel %vm1170, %v1223, 0
        %1237 = vmatpush.msra.mxu0 0.0
        %1238 = vmatpush.msra.mxu0 0.0
        %1239 = vmatpush.msra.mxu0 0.0
        %1240 = vmatpush.msra.mxu0 0.0
        %1241 = vmatpush.msra.mxu0 0.0
        %1242 = vmatpush.msra.mxu0 0.0
        %1243 = vmatpush.msra.mxu0 0.0
        %1244 = vmatpush.msra.mxu0 0.0
        %1245 = vmatpush.msra.mxu0 %v1231
        %1246 = vmatpush.msra.mxu0 %v1230
        %1247 = vmatpush.msra.mxu0 %v1229
        %1248 = vmatpush.msra.mxu0 %v1228
        %1249 = vmatpush.msra.mxu0 %v1227
        %1250 = vmatpush.msra.mxu0 %v1226
        %1251 = vmatpush.msra.mxu0 %v1225
        %1252 = vmatpush.msra.mxu0 %v1224
        %1253 = vmatmul.f32.gmra.mxu0 %v1235
        %v1254 = vpop.f32.mrf.mxu0
        %v1255 = vadd.f32 %v1233, %v1254
        %1256 = vdwg.mxu0
        %vm1257 = vcmp.ge.f32.partialorder %v1255, 0.0
        %v1258 = vstv %s1177
        %v1259 = vmul.f32 %v1258, %v1255
        %v1260 = vsel %vm1257, %v1255, %v1259
        %v1261 = vld [vmem:[%s10 + $0x1] sm:$0x1]
        %v1262 = vperm.slane %v1261, 0
        %v1263 = vmul.f32 %v1260, %v1262
        %v1264 = vld [vmem:[%s10 + $0x2] sm:$0x1]
        %v1265 = vperm.slane %v1264, 0
        %v1266 = vadd.f32 %v1263, %v1265
        %1267 = vst [vmem:[#allocation4] sm:$0xff] 0.0
        %1268 = vst [vmem:[#allocation4 + $0x2] sm:$0xf] %v1266
        %s1269 = sld [smem:[#allocation5 + $0x3]]
        %v1270 = vld [vmem:[%s11] sm:$0x1]
        %v1271 = vld [vmem:[#allocation4] ss:$4 sm:$0x1]
        %v1272 = vmul.f32 %v1270, %v1271
        %v1273 = vld [vmem:[%s11 + $0x1] sm:$0x1]
        %s1274 = scalar_lea.vmem [#allocation4], 1
        %v1275 = vld [vmem:[%s1274] ss:$4 sm:$0x1]
        %v1276 = vmul.f32 %v1273, %v1275
        %v1277 = vadd.f32 %v1272, %v1276
        %v1278 = vld [vmem:[%s11 + $0x2] sm:$0x1]
        %s1279 = scalar_lea.vmem [#allocation4], 2
        %v1280 = vld [vmem:[%s1279] ss:$4 sm:$0x1]
        %v1281 = vmul.f32 %v1278, %v1280
        %v1282 = vadd.f32 %v1277, %v1281
        %v1283 = vld [vmem:[%s11 + $0x3] sm:$0x1]
        %s1284 = scalar_lea.vmem [#allocation4], 3
        %v1285 = vld [vmem:[%s1284] ss:$4 sm:$0x1]
        %v1286 = vmul.f32 %v1283, %v1285
        %v1287 = vadd.f32 %v1282, %v1286
        %v1288 = vld [vmem:[%s11 + $0x4] sm:$0x1]
        %s1289 = scalar_lea.vmem [#allocation4], 4
        %v1290 = vld [vmem:[%s1289] ss:$4 sm:$0x1]
        %v1291 = vmul.f32 %v1288, %v1290
        %v1292 = vadd.f32 %v1287, %v1291
        %v1293 = vld [vmem:[%s11 + $0x5] sm:$0x1]
        %s1294 = scalar_lea.vmem [#allocation4], 5
        %v1295 = vld [vmem:[%s1294] ss:$4 sm:$0x1]
        %v1296 = vmul.f32 %v1293, %v1295
        %v1297 = vadd.f32 %v1292, %v1296
        %v1298 = vld [vmem:[%s11 + $0x6] sm:$0x1]
        %s1299 = scalar_lea.vmem [#allocation4], 6
        %v1300 = vld [vmem:[%s1299] ss:$4 sm:$0x1]
        %v1301 = vmul.f32 %v1298, %v1300
        %v1302 = vadd.f32 %v1297, %v1301
        %v1303 = vld [vmem:[%s11 + $0x7] sm:$0x1]
        %s1304 = scalar_lea.vmem [#allocation4], 7
        %v1305 = vld [vmem:[%s1304] ss:$4 sm:$0x1]
        %v1306 = vmul.f32 %v1303, %v1305
        %v1307 = vadd.f32 %v1302, %v1306
        %v1308 = vld [vmem:[%s12] sm:$0xff]
        %v1309 = vld [vmem:[%s12 + $0x8] sm:$0xff]
        %v1310 = vld [vmem:[%s12 + $0x10] sm:$0xff]
        %v1311 = vld [vmem:[%s12 + $0x18] sm:$0xff]
        %v1312 = vld [vmem:[%s12 + $0x20] sm:$0xff]
        %v1313 = vld [vmem:[%s12 + $0x28] sm:$0xff]
        %v1314 = vld [vmem:[%s12 + $0x30] sm:$0xff]
        %v1315 = vld [vmem:[%s12 + $0x38] sm:$0xff]
        %v1316 = vld [vmem:[%s12 + $0x40] sm:$0xff]
        %v1317 = vld [vmem:[%s12 + $0x48] sm:$0xff]
        %v1318 = vld [vmem:[%s12 + $0x50] sm:$0xff]
        %v1319 = vld [vmem:[%s12 + $0x58] sm:$0xff]
        %v1320 = vld [vmem:[%s12 + $0x60] sm:$0xff]
        %v1321 = vld [vmem:[%s12 + $0x68] sm:$0xff]
        %v1322 = vld [vmem:[%s12 + $0x70] sm:$0xff]
        %v1323 = vld [vmem:[%s12 + $0x78] sm:$0xff]
        %v1324 = vld [vmem:[%s12 + $0x80] sm:$0xff]
        %v1325 = vld [vmem:[%s12 + $0x88] sm:$0xff]
        %v1326 = vld [vmem:[%s12 + $0x90] sm:$0xff]
        %v1327 = vld [vmem:[%s12 + $0x98] sm:$0xff]
        %v1328 = vld [vmem:[%s12 + $0xa0] sm:$0xff]
        %v1329 = vld [vmem:[%s12 + $0xa8] sm:$0xff]
        %v1330 = vld [vmem:[%s12 + $0xb0] sm:$0xff]
        %v1331 = vld [vmem:[%s12 + $0xb8] sm:$0xff]
        %v1332 = vld [vmem:[%s12 + $0xc0] sm:$0xff]
        %v1333 = vld [vmem:[%s12 + $0xc8] sm:$0xff]
        %v1334 = vld [vmem:[%s12 + $0xd0] sm:$0xff]
        %v1335 = vld [vmem:[%s12 + $0xd8] sm:$0xff]
        %v1336 = vld [vmem:[%s12 + $0xe0] sm:$0xff]
        %v1337 = vld [vmem:[%s12 + $0xe8] sm:$0xff]
        %v1338 = vld [vmem:[%s12 + $0xf0] sm:$0xff]
        %v1339 = vld [vmem:[%s12 + $0xf8] sm:$0xff]
        %v1340 = vld [vmem:[%s13] ss:$4 sm:$0x3]
        %v1342 = vperm.slane %v1340, 0
        %v1343 = vperm.slane %v1340, 1
        %1346 = vmatpush.msra.mxu0 %v1338
        %1347 = vmatpush.msra.mxu0 %v1336
        %1348 = vmatpush.msra.mxu0 %v1334
        %1349 = vmatpush.msra.mxu0 %v1332
        %1350 = vmatpush.msra.mxu0 %v1330
        %1351 = vmatpush.msra.mxu0 %v1328
        %1352 = vmatpush.msra.mxu0 %v1326
        %1353 = vmatpush.msra.mxu0 %v1324
        %1354 = vmatpush.msra.mxu0 %v1322
        %1355 = vmatpush.msra.mxu0 %v1320
        %1356 = vmatpush.msra.mxu0 %v1318
        %1357 = vmatpush.msra.mxu0 %v1316
        %1358 = vmatpush.msra.mxu0 %v1314
        %1359 = vmatpush.msra.mxu0 %v1312
        %1360 = vmatpush.msra.mxu0 %v1310
        %1361 = vmatpush.msra.mxu0 %v1308
        %1362 = vmatmul.f32.gmra.mxu0 %v1307
        %v1363 = vpop.f32.mrf.mxu0
        %v1364 = vadd.f32 %v1342, %v1363
        %1365 = vdwg.mxu0
        %1366 = vmatpush.msra.mxu0 %v1339
        %1367 = vmatpush.msra.mxu0 %v1337
        %1368 = vmatpush.msra.mxu0 %v1335
        %1369 = vmatpush.msra.mxu0 %v1333
        %1370 = vmatpush.msra.mxu0 %v1331
        %1371 = vmatpush.msra.mxu0 %v1329
        %1372 = vmatpush.msra.mxu0 %v1327
        %1373 = vmatpush.msra.mxu0 %v1325
        %1374 = vmatpush.msra.mxu0 %v1323
        %1375 = vmatpush.msra.mxu0 %v1321
        %1376 = vmatpush.msra.mxu0 %v1319
        %1377 = vmatpush.msra.mxu0 %v1317
        %1378 = vmatpush.msra.mxu0 %v1315
        %1379 = vmatpush.msra.mxu0 %v1313
        %1380 = vmatpush.msra.mxu0 %v1311
        %1381 = vmatpush.msra.mxu0 %v1309
        %1382 = vmatmul.f32.gmra.mxu0 %v1307
        %v1383 = vpop.f32.mrf.mxu0
        %v1384 = vadd.f32 %v1343, %v1383
        %1385 = vdwg.mxu0
        %vm1386 = vcmp.ge.f32.partialorder %v1364, 0.0
        %vm1387 = vcmp.ge.f32.partialorder %v1384, 0.0
        %v1388 = vstv %s1269
        %v1389 = vmul.f32 %v1388, %v1364
        %v1390 = vmul.f32 %v1388, %v1384
        %v1391 = vsel %vm1386, %v1364, %v1389
        %v1392 = vsel %vm1387, %v1384, %v1390
        %s1393 = scalar_lea.vmem %s13, 1
        %v1394 = vld [vmem:[%s1393] ss:$4 sm:$0x3]
        %v1396 = vperm.slane %v1394, 0
        %v1397 = vperm.slane %v1394, 1
        %v1400 = vmul.f32 %v1391, %v1396
        %v1401 = vmul.f32 %v1392, %v1397
        %s1402 = scalar_lea.vmem %s13, 2
        %v1403 = vld [vmem:[%s1402] ss:$4 sm:$0x3]
        %v1405 = vperm.slane %v1403, 0
        %v1406 = vperm.slane %v1403, 1
        %v1409 = vadd.f32 %v1400, %v1405
        %v1410 = vadd.f32 %v1401, %v1406
        %v1411 = vld [vmem:[%s14] sm:$0xff]
        %v1412 = vld [vmem:[%s14 + $0x8] sm:$0xff]
        %v1413 = vld [vmem:[%s14 + $0x10] sm:$0xff]
        %v1414 = vld [vmem:[%s14 + $0x18] sm:$0xff]
        %v1415 = vld [vmem:[%s14 + $0x20] sm:$0xff]
        %v1416 = vld [vmem:[%s14 + $0x28] sm:$0xff]
        %v1417 = vld [vmem:[%s14 + $0x30] sm:$0xff]
        %v1418 = vld [vmem:[%s14 + $0x38] sm:$0xff]
        %v1419 = vld [vmem:[%s14 + $0x40] sm:$0xff]
        %v1420 = vld [vmem:[%s14 + $0x48] sm:$0xff]
        %v1421 = vld [vmem:[%s14 + $0x50] sm:$0xff]
        %v1422 = vld [vmem:[%s14 + $0x58] sm:$0xff]
        %v1423 = vld [vmem:[%s14 + $0x60] sm:$0xff]
        %v1424 = vld [vmem:[%s14 + $0x68] sm:$0xff]
        %v1425 = vld [vmem:[%s14 + $0x70] sm:$0xff]
        %v1426 = vld [vmem:[%s14 + $0x78] sm:$0xff]
        %v1427 = vld [vmem:[%s14 + $0x80] sm:$0xff]
        %v1428 = vld [vmem:[%s14 + $0x88] sm:$0xff]
        %v1429 = vld [vmem:[%s14 + $0x90] sm:$0xff]
        %v1430 = vld [vmem:[%s14 + $0x98] sm:$0xff]
        %v1431 = vld [vmem:[%s14 + $0xa0] sm:$0xff]
        %v1432 = vld [vmem:[%s14 + $0xa8] sm:$0xff]
        %v1433 = vld [vmem:[%s14 + $0xb0] sm:$0xff]
        %v1434 = vld [vmem:[%s14 + $0xb8] sm:$0xff]
        %v1435 = vld [vmem:[%s14 + $0xc0] sm:$0xff]
        %v1436 = vld [vmem:[%s14 + $0xc8] sm:$0xff]
        %v1437 = vld [vmem:[%s14 + $0xd0] sm:$0xff]
        %v1438 = vld [vmem:[%s14 + $0xd8] sm:$0xff]
        %v1439 = vld [vmem:[%s14 + $0xe0] sm:$0xff]
        %v1440 = vld [vmem:[%s14 + $0xe8] sm:$0xff]
        %v1441 = vld [vmem:[%s14 + $0xf0] sm:$0xff]
        %v1442 = vld [vmem:[%s14 + $0xf8] sm:$0xff]
        %v1443 = vld [vmem:[%s15] sm:$0x1]
        %1444 = vmatpush.msra.mxu0 %v1426
        %1445 = vmatpush.msra.mxu0 %v1425
        %1446 = vmatpush.msra.mxu0 %v1424
        %1447 = vmatpush.msra.mxu0 %v1423
        %1448 = vmatpush.msra.mxu0 %v1422
        %1449 = vmatpush.msra.mxu0 %v1421
        %1450 = vmatpush.msra.mxu0 %v1420
        %1451 = vmatpush.msra.mxu0 %v1419
        %1452 = vmatpush.msra.mxu0 %v1418
        %1453 = vmatpush.msra.mxu0 %v1417
        %1454 = vmatpush.msra.mxu0 %v1416
        %1455 = vmatpush.msra.mxu0 %v1415
        %1456 = vmatpush.msra.mxu0 %v1414
        %1457 = vmatpush.msra.mxu0 %v1413
        %1458 = vmatpush.msra.mxu0 %v1412
        %1459 = vmatpush.msra.mxu0 %v1411
        %1460 = vmatmul.f32.gmra.mxu0 %v1409
        %v1461 = vpop.f32.mrf.mxu0
        %v1462 = vadd.f32 %v1443, %v1461
        %1463 = vdwg.mxu0
        %1464 = vmatpush.msra.mxu0 %v1442
        %1465 = vmatpush.msra.mxu0 %v1441
        %1466 = vmatpush.msra.mxu0 %v1440
        %1467 = vmatpush.msra.mxu0 %v1439
        %1468 = vmatpush.msra.mxu0 %v1438
        %1469 = vmatpush.msra.mxu0 %v1437
        %1470 = vmatpush.msra.mxu0 %v1436
        %1471 = vmatpush.msra.mxu0 %v1435
        %1472 = vmatpush.msra.mxu0 %v1434
        %1473 = vmatpush.msra.mxu0 %v1433
        %1474 = vmatpush.msra.mxu0 %v1432
        %1475 = vmatpush.msra.mxu0 %v1431
        %1476 = vmatpush.msra.mxu0 %v1430
        %1477 = vmatpush.msra.mxu0 %v1429
        %1478 = vmatpush.msra.mxu0 %v1428
        %1479 = vmatpush.msra.mxu0 %v1427
        %1480 = vmatmul.f32.gmra.mxu0 %v1410
        %v1481 = vpop.f32.mrf.mxu0
        %v1482 = vadd.f32 %v1462, %v1481
        %1483 = vdwg.mxu0
        %s1484 = sld [smem:[#allocation5 + $0x4]]
        %vm1485 = vcmp.ge.f32.partialorder %v1482, 0.0
        %v1486 = vstv %s1484
        %v1487 = vmul.f32 %v1486, %v1482
        %v1488 = vsel %vm1485, %v1482, %v1487
        %v1489 = vld [vmem:[%s15 + $0x1] sm:$0x1]
        %v1490 = vmul.f32 %v1488, %v1489
        %v1491 = vld [vmem:[%s15 + $0x2] sm:$0x1]
        %v1492 = vadd.f32 %v1490, %v1491
        %v1493 = vld [vmem:[%s16] sm:$0xff]
        %v1494 = vld [vmem:[%s16 + $0x8] sm:$0xff]
        %v1495 = vld [vmem:[%s16 + $0x10] sm:$0xff]
        %v1496 = vld [vmem:[%s16 + $0x18] sm:$0xff]
        %v1497 = vld [vmem:[%s16 + $0x20] sm:$0xff]
        %v1498 = vld [vmem:[%s16 + $0x28] sm:$0xff]
        %v1499 = vld [vmem:[%s16 + $0x30] sm:$0xff]
        %v1500 = vld [vmem:[%s16 + $0x38] sm:$0xff]
        %v1501 = vld [vmem:[%s17] sm:$0x1]
        %v1503 = vsel %vm1170, %v1492, 0
        %1505 = vmatpush.msra.mxu0 0.0
        %1506 = vmatpush.msra.mxu0 0.0
        %1507 = vmatpush.msra.mxu0 0.0
        %1508 = vmatpush.msra.mxu0 0.0
        %1509 = vmatpush.msra.mxu0 0.0
        %1510 = vmatpush.msra.mxu0 0.0
        %1511 = vmatpush.msra.mxu0 0.0
        %1512 = vmatpush.msra.mxu0 0.0
        %1513 = vmatpush.msra.mxu0 %v1500
        %1514 = vmatpush.msra.mxu0 %v1499
        %1515 = vmatpush.msra.mxu0 %v1498
        %1516 = vmatpush.msra.mxu0 %v1497
        %1517 = vmatpush.msra.mxu0 %v1496
        %1518 = vmatpush.msra.mxu0 %v1495
        %1519 = vmatpush.msra.mxu0 %v1494
        %1520 = vmatpush.msra.mxu0 %v1493
        %1521 = vmatmul.f32.gmra.mxu0 %v1503
        %v1522 = vpop.f32.mrf.mxu0
        %v1523 = vadd.f32 %v1501, %v1522
        %1524 = vdwg.mxu0
        %v1525 = vmax.f32 %v1523, 0.0
        %v1526 = vld [vmem:[%s18] sm:$0xff]
        %v1527 = vld [vmem:[%s18 + $0x8] sm:$0xff]
        %v1528 = vld [vmem:[%s18 + $0x10] sm:$0xff]
        %v1529 = vld [vmem:[%s18 + $0x18] sm:$0xff]
        %v1530 = vld [vmem:[%s18 + $0x20] sm:$0xff]
        %v1531 = vld [vmem:[%s18 + $0x28] sm:$0xff]
        %v1532 = vld [vmem:[%s18 + $0x30] sm:$0xff]
        %v1533 = vld [vmem:[%s18 + $0x38] sm:$0xff]
        %v1534 = vld [vmem:[%s19] sm:$0x1]
        %v1536 = vsel %vm1170, %v1525, 0
        %1538 = vmatpush.msra.mxu0 0.0
        %1539 = vmatpush.msra.mxu0 0.0
        %1540 = vmatpush.msra.mxu0 0.0
        %1541 = vmatpush.msra.mxu0 0.0
        %1542 = vmatpush.msra.mxu0 0.0
        %1543 = vmatpush.msra.mxu0 0.0
        %1544 = vmatpush.msra.mxu0 0.0
        %1545 = vmatpush.msra.mxu0 0.0
        %1546 = vmatpush.msra.mxu0 %v1533
        %1547 = vmatpush.msra.mxu0 %v1532
        %1548 = vmatpush.msra.mxu0 %v1531
        %1549 = vmatpush.msra.mxu0 %v1530
        %1550 = vmatpush.msra.mxu0 %v1529
        %1551 = vmatpush.msra.mxu0 %v1528
        %1552 = vmatpush.msra.mxu0 %v1527
        %1553 = vmatpush.msra.mxu0 %v1526
        %1554 = vmatmul.f32.gmra.mxu0 %v1536
        %v1555 = vpop.f32.mrf.mxu0
        %v1556 = vadd.f32 %v1534, %v1555
        %1557 = vdwg.mxu0
        %vm1558 = vcmask 32768
        %1559 = vst.msk [vmem:[%s635] sm:$0x1] %vm1558, %v1556
        %s1560 = sand.u32 %s468, 1
        %s1561 = scalar_lea.sflag [#allocation6], %s1560
        %s1562 = sand.u32 %s468, 1
        %s1563 = scalar_lea.vmem [#allocation8], %s1562
        // Predicated region
        $region105: #{tpu_custom_call.1} parent=99 // pred_check
          %p1564 = pneg %p478
        $region106: #{tpu_custom_call.1} parent=99 // pred_check_branch
          %1566 = sbr.rel (%p1564) target = $region108
        $region107: #{tpu_custom_call.1} parent=99 // pred_region
          %1568 = vsyncadd %s1561, 0
          %s1569 = scalar_lea.hbm %s20, %s35
          %s1571 = sshll.u32 %s1563, 4
          %s1572 = int_to_ptr.vmem [resolvable:$true] %s1571
          %s1573 = sshll.u32 %s1569, 4
          %s1574 = int_to_ptr.hbm [resolvable:$true] %s1573
          %1576 = dma.vmem_to_hbm [thread:$0]  %s1572, 16, %s1574, %s1561
        $region108: #{tpu_custom_call.1} parent=99 // pred_fallthru
          _
      $region100: #{tpu_custom_call.1} parent=5 // pred_fallthru
        _
      %p1577 = scmp.le.s32.totalorder 2, %s30
      // Predicated region
      $region109: #{tpu_custom_call.1} parent=5 // pred_check
        %p1578 = pneg %p1577
      $region110: #{tpu_custom_call.1} parent=5 // pred_check_branch
        %1580 = sbr.rel (%p1578) target = $region112
      $region111: #{tpu_custom_call.1} parent=5 // pred_region
        %s1581 = ssub.s32 %s30, 2
        // Predicated region
        $region113: #{tpu_custom_call.1} parent=111 // pred_check
          %p1582 = pneg %p484
        $region114: #{tpu_custom_call.1} parent=111 // pred_check_branch
          %1584 = sbr.rel (%p1582) target = $region116
        $region115: #{tpu_custom_call.1} parent=111 // pred_region
          %s1585 = sand.u32 %s469, 1
          %s1586 = scalar_lea.sflag [#allocation6], %s1585
          %s1587 = sand.u32 %s469, 1
          %s1588 = scalar_lea.vmem [#allocation8], %s1587
          %1590 = dma.done %s1586, 16
        $region116: #{tpu_custom_call.1} parent=111 // pred_fallthru
          _
      $region112: #{tpu_custom_call.1} parent=5 // pred_fallthru
        _
    $region6: #{tpu_custom_call.1} parent=1 // loop_footer
      %s34 = sadd.s32 1, %s30
    $region7: #{tpu_custom_call.1} parent=1 // loop_footer_branch
      %29 = sbr.rel target = $region3
    $region8: #{tpu_custom_call.1} parent=1 // loop_exit
      _
    %1591 = vsyncpa [#allocation6], 1
    %s1592 = scalar_lea.sflag [#allocation6], 1
    %1593 = vsyncpa %s1592, 1
    %1594 = vsyncpa [#allocation7], 1
    %s1595 = scalar_lea.sflag [#allocation7], 1
    %1596 = vsyncpa %s1595, 1

</llo_original>
